<compile_context>
chip_gen: v5e
topology: v5e:2x2
jax: 0.10.0
libtpu: 0.0.40
codegen_flags: <defaults>
</compile_context>

<pallas_src>
import jax
import jax.numpy as jnp
from jax.experimental import pallas as pl
from jax.experimental.pallas import tpu as pltpu


# ----------------------------------------------------------------------------- helpers
def _round_up(x, m):
    return ((int(x) + m - 1) // m) * m


def _vmem_cap_bytes():
    try:
        cap = int(pltpu.get_tpu_info().vmem_capacity_bytes)
    except Exception:
        cap = 64 * 1024 * 1024        # safe fallback (v7x physical VMEM per TC)
    return int(cap * 0.9)


def _block_vmem_bytes(BB, TC, N, H, w_bytes):
    """Estimate resident VMEM for one grid step (double-buffered I/O)."""
    def pad(r, c, b=4):
        return _round_up(max(r, 1), 8) * _round_up(max(c, 1), 128) * b
    inputs = (pad(BB, TC * N) + pad(BB, N)
              + pad(N, 4 * H, w_bytes) + pad(H, 4 * H, w_bytes)
              + pad(1, 4 * H) + 2 * pad(1, H))
    outputs = pad(BB, TC * N) + pad(BB, TC * H)
    scratch = 2 * pad(BB, H)
    return int(1.25 * (2 * (inputs + outputs) + scratch))


def _pick_time_chunk(T1, N, H, max_chunk):
    """Largest chunk <= max_chunk that divides T1 with lane-aligned slab blocks."""
    if T1 <= max_chunk:
        return T1
    for tc in range(min(max_chunk, T1), 0, -1):
        if T1 % tc == 0 and (tc * N) % 128 == 0 and (tc * H) % 128 == 0:
            return tc
    return T1   # no aligned divisor -> fall back to a single fully-unrolled chunk


# ----------------------------------------------------------------------------- kernel
def _encoder_kernel(x_ref, xc_ref, wx_ref, whh_ref, b_ref, wah_ref, was_ref,
                    xtilde_ref, xenc_ref, state_ref):
    # x_ref:      (BB, TC*N)  lane-dense input slab for this batch block / time chunk
    # xc_ref:     (BB, N)     precomputed sum_t w_x[t]*X[:,t,:] + b_attn
    # wx_ref:     (N, 4H)     LSTM input weights  W_ih^T   (gate order i, f, g, o)
    # whh_ref:    (H, 4H)     LSTM hidden weights W_hh^T
    # b_ref:      (1, 4H)     b_ih + b_hh
    # wah_ref:    (1, H)      attention weights acting on h
    # was_ref:    (1, H)      attention weights acting on c
    # xtilde_ref: (BB, TC*N)  output slab: attention-weighted inputs
    # xenc_ref:   (BB, TC*H)  output slab: encoder hidden states
    # state_ref:  (2, BB, H)  VMEM scratch carrying [h; c] across time chunks
    BB = x_ref.shape[0]
    N = wx_ref.shape[0]
    H = whh_ref.shape[0]
    TC = x_ref.shape[1] // N
    t_chunk = pl.program_id(1)
    mm_dtype = wx_ref.dtype

    @pl.when(t_chunk == 0)
    def _():
        state_ref[...] = jnp.zeros_like(state_ref)

    # Weights / broadcasts hoisted out of the (unrolled) time loop.
    w_x = wx_ref[...]                                      # (N, 4H)
    w_hh = whh_ref[...]                                    # (H, 4H)
    bias = jnp.broadcast_to(b_ref[...], (BB, 4 * H))       # (BB, 4H)
    w_ah = jnp.broadcast_to(wah_ref[...], (BB, H))         # (BB, H)
    w_as = jnp.broadcast_to(was_ref[...], (BB, H))         # (BB, H)
    xc = xc_ref[...]                                       # (BB, N)

    # LSTM state lives in vregs inside the chunk, VMEM scratch across chunks.
    h = state_ref[0, :, :]
    c = state_ref[1, :, :]

    # TC is a static chunk length -> static indices, LLO can overlap the
    # per-step loads/stores with the serial h/c chain.
    for t in range(TC):
        # attention logits: one cross-lane reduce for the combined h/c term
        hs = jnp.sum(h * w_ah + c * w_as, axis=1, keepdims=True)   # (BB, 1)
        e = hs + xc                                                # (BB, N)
        e = e - jnp.max(e, axis=1, keepdims=True)
        p = jnp.exp(e)
        d = jnp.sum(p, axis=1, keepdims=True)
        r = pl.reciprocal(d, approx=True)
        r = r * (2.0 - d * r)              # one Newton step -> ~f32-exact softmax
        alpha = p * r

        x_tilde = alpha * x_ref[:, t * N:(t + 1) * N]              # (BB, N)

        # Two MXU pushes (no lane concat); PyTorch gate order i, f, g, o.
        gates = (jnp.dot(x_tilde.astype(mm_dtype), w_x,
                         preferred_element_type=jnp.float32)
                 + jnp.dot(h.astype(mm_dtype), w_hh,
                           preferred_element_type=jnp.float32)
                 + bias)                                           # (BB, 4H)
        s = jax.nn.sigmoid(gates)          # one full-width EUP pass
        i_g = s[:, 0:H]
        f_g = s[:, H:2 * H]
        o_g = s[:, 3 * H:4 * H]
        g_g = jnp.tanh(gates[:, 2 * H:3 * H])
        c = f_g * c + i_g * g_g
        h = o_g * jnp.tanh(c)

        xtilde_ref[:, t * N:(t + 1) * N] = x_tilde
        xenc_ref[:, t * H:(t + 1) * H] = h

    @pl.when(t_chunk + 1 < pl.num_programs(1))
    def _():
        state_ref[0, :, :] = h
        state_ref[1, :, :] = c


# ----------------------------------------------------------------------------- wrapper
def encoder_forward(X, params, block_b=256, use_bf16_matmul=False, max_time_chunk=32):
    """X: (B, T-1, input_size) float32. Returns (X_tilde, X_encoded) batch-major."""
    X = X.astype(jnp.float32)
    B, T1, N = X.shape
    H = params["w_attn_h"].shape[1]
    w_bytes = 2 if use_bf16_matmul else 4

    # Time-invariant part of the attention logits (one contraction, done by XLA),
    # with the attention bias folded in.
    x_contrib = jnp.einsum("btn,t->bn", X, params["w_attn_x"]) + params["b_attn"]  # (B, N)

    TC = _pick_time_chunk(T1, N, H, max_time_chunk)

    # Batch block: big enough to feed the MXU, but never more than ~half the
    # (padded) batch so the grid has >=2 steps (megacore sharding on v7x).
    BB = min(int(block_b), _round_up(max(1, -(-B // 2)), 8))
    BB = max(8, (BB // 8) * 8)
    B_pad = _round_up(B, BB)
    if B_pad // BB < 2:
        B_pad = 2 * BB

    # VMEM budget from the actual double-buffered block bytes; shrink BB if needed.
    cap = _vmem_cap_bytes()
    while _block_vmem_bytes(BB, TC, N, H, w_bytes) > cap and BB > 8:
        BB = max(8, ((BB // 2) // 8) * 8)
        B_pad = _round_up(B, BB)
        if B_pad // BB < 2:
            B_pad = 2 * BB
    need = _block_vmem_bytes(BB, TC, N, H, w_bytes)
    vmem_limit = int(min(cap, max(need, 32 * 1024 * 1024)))

    # Lane-dense slabs + batch padding.
    Xs = X.reshape(B, T1 * N)
    if B_pad != B:
        Xs = jnp.pad(Xs, ((0, B_pad - B), (0, 0)))
        xcp = jnp.pad(x_contrib, ((0, B_pad - B), (0, 0)))
    else:
        xcp = x_contrib

    w_x = params["w_ih_t"]
    w_hh = params["w_hh_t"]
    if use_bf16_matmul:
        w_x = w_x.astype(jnp.bfloat16)
        w_hh = w_hh.astype(jnp.bfloat16)

    grid = (B_pad // BB, T1 // TC)
    out_xt, out_xe = pl.pallas_call(
        _encoder_kernel,
        out_shape=(jax.ShapeDtypeStruct((B_pad, T1 * N), jnp.float32),
                   jax.ShapeDtypeStruct((B_pad, T1 * H), jnp.float32)),
        grid_spec=pltpu.PrefetchScalarGridSpec(
            num_scalar_prefetch=0,
            grid=grid,
            in_specs=[
                pl.BlockSpec((BB, TC * N), lambda b, t: (b, t)),     # X slab chunk
                pl.BlockSpec((BB, N), lambda b, t: (b, 0)),          # x_contrib
                pl.BlockSpec((N, 4 * H), lambda b, t: (0, 0)),       # W_ih^T
                pl.BlockSpec((H, 4 * H), lambda b, t: (0, 0)),       # W_hh^T
                pl.BlockSpec((1, 4 * H), lambda b, t: (0, 0)),       # LSTM bias
                pl.BlockSpec((1, H), lambda b, t: (0, 0)),           # attn w_h
                pl.BlockSpec((1, H), lambda b, t: (0, 0)),           # attn w_s
            ],
            out_specs=[
                pl.BlockSpec((BB, TC * N), lambda b, t: (b, t)),
                pl.BlockSpec((BB, TC * H), lambda b, t: (b, t)),
            ],
            scratch_shapes=[pltpu.VMEM((2, BB, H), jnp.float32)],
        ),
        compiler_params=pltpu.CompilerParams(
            dimension_semantics=("parallel", "arbitrary"),
            vmem_limit_bytes=vmem_limit),
    )(Xs, xcp, w_x, w_hh, params["b_lstm"], params["w_attn_h"], params["w_attn_s"])

    X_tilde = out_xt[:B].reshape(B, T1, N)
    X_encoded = out_xe[:B].reshape(B, T1, H)
    return X_tilde, X_encoded


# ----------------------------------------------------------------------------- params / reference
def init_params(key, T, input_size, hidden):
    """Deterministic synthetic params with the same shapes/init as the PyTorch module."""
    T1 = T - 1
    k_lstm = 1.0 / jnp.sqrt(hidden)
    k_attn = 1.0 / jnp.sqrt(2 * hidden + T1)
    ks = jax.random.split(key, 6)
    w_ih = jax.random.uniform(ks[0], (4 * hidden, input_size), jnp.float32, -k_lstm, k_lstm)
    w_hh = jax.random.uniform(ks[1], (4 * hidden, hidden), jnp.float32, -k_lstm, k_lstm)
    b_ih = jax.random.uniform(ks[2], (4 * hidden,), jnp.float32, -k_lstm, k_lstm)
    b_hh = jax.random.uniform(ks[3], (4 * hidden,), jnp.float32, -k_lstm, k_lstm)
    w_attn = jax.random.uniform(ks[4], (1, 2 * hidden + T1), jnp.float32, -k_attn, k_attn)
    b_attn = jax.random.uniform(ks[5], (1,), jnp.float32, -k_attn, k_attn)
    return {
        "w_ih_t": w_ih.T,                                   # (N, 4H)
        "w_hh_t": w_hh.T,                                   # (H, 4H)
        "b_lstm": (b_ih + b_hh).reshape(1, 4 * hidden),     # (1, 4H)
        "w_attn_h": w_attn[:, :hidden],                     # (1, H)
        "w_attn_s": w_attn[:, hidden:2 * hidden],           # (1, H)
        "w_attn_x": w_attn[0, 2 * hidden:],                 # (T1,)
        "b_attn": b_attn[0],                                # scalar
    }


def encoder_reference(X, params):
    """Pure-JAX re-implementation of the PyTorch forward, for correctness checking."""
    B, T1, N = X.shape
    H = params["w_attn_h"].shape[1]
    h = jnp.zeros((B, H), jnp.float32)
    c = jnp.zeros((B, H), jnp.float32)
    x_contrib = jnp.einsum("btn,t->bn", X, params["w_attn_x"])
    xt_list, xe_list = [], []
    for t in range(T1):
        hs = h @ params["w_attn_h"][0] + c @ params["w_attn_s"][0]
        e = hs[:, None] + x_contrib + params["b_attn"]
        alpha = jax.nn.softmax(e, axis=1)
        x_tilde = alpha * X[:, t, :]
        gates = x_tilde @ params["w_ih_t"] + h @ params["w_hh_t"] + params["b_lstm"]
        i_g = jax.nn.sigmoid(gates[:, 0:H])
        f_g = jax.nn.sigmoid(gates[:, H:2 * H])
        g_g = jnp.tanh(gates[:, 2 * H:3 * H])
        o_g = jax.nn.sigmoid(gates[:, 3 * H:4 * H])
        c = f_g * c + i_g * g_g
        h = o_g * jnp.tanh(c)
        xt_list.append(x_tilde)
        xe_list.append(h)
    return jnp.stack(xt_list, axis=1), jnp.stack(xe_list, axis=1)


if __name__ == "__main__":
    # Small shapes consistent with the module: X is (batch, T-1, input_size)
    B, T, N, H = 4, 9, 16, 32          # T-1 = 8 time steps
    key = jax.random.PRNGKey(0)
    k_x, k_p = jax.random.split(key)
    X = jax.random.normal(k_x, (B, T - 1, N), jnp.float32)
    params = init_params(k_p, T, N, H)

    # f32 MXU path
    X_tilde, X_encoded = jax.block_until_ready(encoder_forward(X, params))
    Xt_ref, Xe_ref = encoder_reference(X, params)
    assert X_tilde.shape == (B, T - 1, N) and X_encoded.shape == (B, T - 1, H)
    assert jnp.allclose(X_tilde, Xt_ref, rtol=2e-3, atol=2e-3)
    assert jnp.allclose(X_encoded, Xe_ref, rtol=2e-3, atol=2e-3)

    # bf16 MXU path (native input dtype on v6e/v7x); looser tolerance
    Xt_bf, Xe_bf = jax.block_until_ready(
        encoder_forward(X, params, use_bf16_matmul=True))
    assert jnp.allclose(Xt_bf, Xt_ref, rtol=3e-2, atol=3e-2)
    assert jnp.allclose(Xe_bf, Xe_ref, rtol=3e-2, atol=3e-2)

    print("KERNEL_OK")
</pallas_src>

<mosaic_0001>
module attributes {stable_mosaic.version = 11 : i64} {
  func.func @_encoder_kernel(%arg0: i32, %arg1: i32, %arg2: memref<8x128xf32, #tpu.memory_space<vmem>>, %arg3: memref<8x16xf32, #tpu.memory_space<vmem>>, %arg4: memref<16x128xf32, #tpu.memory_space<vmem>>, %arg5: memref<32x128xf32, #tpu.memory_space<vmem>>, %arg6: memref<1x128xf32, #tpu.memory_space<vmem>>, %arg7: memref<1x32xf32, #tpu.memory_space<vmem>>, %arg8: memref<1x32xf32, #tpu.memory_space<vmem>>, %arg9: memref<8x128xf32, #tpu.memory_space<vmem>>, %arg10: memref<8x256xf32, #tpu.memory_space<vmem>>, %arg11: memref<2x8x32xf32, #tpu.memory_space<vmem>>) attributes {dimension_semantics = [#tpu.dimension_semantics<parallel>, #tpu.dimension_semantics<arbitrary>], iteration_bounds = array<i64: 2, 1>, scalar_prefetch = 0 : i64, scratch_operands = 1 : i64, tpu.core_type = #tpu.core_type<tc>, window_params = [{transform_indices = @transform_0, window_bounds = array<i64: 8, 128>}, {transform_indices = @transform_1, window_bounds = array<i64: 8, 16>}, {pipeline_mode = #tpu.pipeline_mode<synchronous>, transform_indices = @transform_2, window_bounds = array<i64: 16, 128>}, {pipeline_mode = #tpu.pipeline_mode<synchronous>, transform_indices = @transform_3, window_bounds = array<i64: 32, 128>}, {pipeline_mode = #tpu.pipeline_mode<synchronous>, transform_indices = @transform_4, window_bounds = array<i64: 1, 128>}, {pipeline_mode = #tpu.pipeline_mode<synchronous>, transform_indices = @transform_5, window_bounds = array<i64: 1, 32>}, {pipeline_mode = #tpu.pipeline_mode<synchronous>, transform_indices = @transform_6, window_bounds = array<i64: 1, 32>}, {transform_indices = @transform_7, window_bounds = array<i64: 8, 128>}, {transform_indices = @transform_8, window_bounds = array<i64: 8, 256>}]} {
    %c0_i32 = arith.constant 0 : i32
    %0 = arith.cmpi eq, %arg1, %c0_i32 : i32
    %1 = arith.extui %0 : i1 to i32
    %c0_i32_0 = arith.constant 0 : i32
    %2 = arith.cmpi ne, %1, %c0_i32_0 : i32
    scf.if %2 {
      %cst_111 = arith.constant 0.000000e+00 : f32
      %375 = vector.broadcast %cst_111 : f32 to vector<2x8x32xf32>
      %c0_112 = arith.constant 0 : index
      %c0_113 = arith.constant 0 : index
      %c0_114 = arith.constant 0 : index
      %376 = vector.load %arg11[%c0_112, %c0_113, %c0_114] : memref<2x8x32xf32, #tpu.memory_space<vmem>>, vector<2x8x32xf32>
      tpu.vector_store %arg11[%c0_112, %c0_113, %c0_114], %375 {strides = array<i32>} : memref<2x8x32xf32, #tpu.memory_space<vmem>>, vector<2x8x32xf32>,
    } else {
    }
    %c0 = arith.constant 0 : index
    %c0_1 = arith.constant 0 : index
    %3 = vector.load %arg4[%c0, %c0_1] : memref<16x128xf32, #tpu.memory_space<vmem>>, vector<16x128xf32>
    %c0_2 = arith.constant 0 : index
    %c0_3 = arith.constant 0 : index
    %4 = vector.load %arg5[%c0_2, %c0_3] : memref<32x128xf32, #tpu.memory_space<vmem>>, vector<32x128xf32>
    %c0_4 = arith.constant 0 : index
    %c0_5 = arith.constant 0 : index
    %5 = vector.load %arg6[%c0_4, %c0_5] : memref<1x128xf32, #tpu.memory_space<vmem>>, vector<1x128xf32>
    %6 = vector.shape_cast %5 : vector<1x128xf32> to vector<1x128xf32>
    %7 = vector.broadcast %6 : vector<1x128xf32> to vector<8x128xf32>
    %c0_6 = arith.constant 0 : index
    %c0_7 = arith.constant 0 : index
    %8 = vector.load %arg7[%c0_6, %c0_7] : memref<1x32xf32, #tpu.memory_space<vmem>>, vector<1x32xf32>
    %9 = vector.shape_cast %8 : vector<1x32xf32> to vector<1x32xf32>
    %10 = vector.broadcast %9 : vector<1x32xf32> to vector<8x32xf32>
    %c0_8 = arith.constant 0 : index
    %c0_9 = arith.constant 0 : index
    %11 = vector.load %arg8[%c0_8, %c0_9] : memref<1x32xf32, #tpu.memory_space<vmem>>, vector<1x32xf32>
    %12 = vector.shape_cast %11 : vector<1x32xf32> to vector<1x32xf32>
    %13 = vector.broadcast %12 : vector<1x32xf32> to vector<8x32xf32>
    %c0_10 = arith.constant 0 : index
    %c0_11 = arith.constant 0 : index
    %14 = vector.load %arg3[%c0_10, %c0_11] : memref<8x16xf32, #tpu.memory_space<vmem>>, vector<8x16xf32>
    %c0_12 = arith.constant 0 : index
    %c0_13 = arith.constant 0 : index
    %c0_14 = arith.constant 0 : index
    %15 = vector.load %arg11[%c0_12, %c0_13, %c0_14] : memref<2x8x32xf32, #tpu.memory_space<vmem>>, vector<1x8x32xf32>
    %16 = vector.shape_cast %15 : vector<1x8x32xf32> to vector<8x32xf32>
    %c1 = arith.constant 1 : index
    %c0_15 = arith.constant 0 : index
    %c0_16 = arith.constant 0 : index
    %17 = vector.load %arg11[%c1, %c0_15, %c0_16] : memref<2x8x32xf32, #tpu.memory_space<vmem>>, vector<1x8x32xf32>
    %18 = vector.shape_cast %17 : vector<1x8x32xf32> to vector<8x32xf32>
    %19 = arith.mulf %16, %10 : vector<8x32xf32>
    %20 = arith.mulf %18, %13 : vector<8x32xf32>
    %21 = arith.addf %19, %20 : vector<8x32xf32>
    %cst = arith.constant dense<0.000000e+00> : vector<8xf32>
    %22 = vector.multi_reduction <add>, %21, %cst [1] : vector<8x32xf32> to vector<8xf32>
    %23 = vector.shape_cast %22 : vector<8xf32> to vector<8x1xf32>
    %24 = vector.broadcast %23 : vector<8x1xf32> to vector<8x16xf32>
    %25 = arith.addf %24, %14 : vector<8x16xf32>
    %cst_17 = arith.constant dense<0xFF800000> : vector<8xf32>
    %26 = vector.multi_reduction <maximumf>, %25, %cst_17 [1] : vector<8x16xf32> to vector<8xf32>
    %27 = vector.shape_cast %26 : vector<8xf32> to vector<8x1xf32>
    %28 = vector.broadcast %27 : vector<8x1xf32> to vector<8x16xf32>
    %29 = arith.subf %25, %28 : vector<8x16xf32>
    %30 = math.exp %29 : vector<8x16xf32>
    %cst_18 = arith.constant dense<0.000000e+00> : vector<8xf32>
    %31 = vector.multi_reduction <add>, %30, %cst_18 [1] : vector<8x16xf32> to vector<8xf32>
    %32 = vector.shape_cast %31 : vector<8xf32> to vector<8x1xf32>
    %33 = tpu.reciprocal %32 {approx = true} : vector<8x1xf32> -> vector<8x1xf32>
    %34 = arith.mulf %32, %33 : vector<8x1xf32>
    %cst_19 = arith.constant 2.000000e+00 : f32
    %35 = vector.broadcast %cst_19 : f32 to vector<8x1xf32>
    %36 = arith.subf %35, %34 : vector<8x1xf32>
    %37 = arith.mulf %33, %36 : vector<8x1xf32>
    %38 = vector.broadcast %37 : vector<8x1xf32> to vector<8x16xf32>
    %39 = arith.mulf %30, %38 : vector<8x16xf32>
    %c0_20 = arith.constant 0 : index
    %c0_21 = arith.constant 0 : index
    %40 = vector.load %arg2[%c0_20, %c0_21] : memref<8x128xf32, #tpu.memory_space<vmem>>, vector<8x16xf32>
    %41 = arith.mulf %39, %40 : vector<8x16xf32>
    %cst_22 = arith.constant dense<0.000000e+00> : vector<8x128xf32>
    %42 = tpu.matmul %41, %3, %cst_22 {dimension_numbers = #tpu.dot_dimension_numbers<[1], [0], [0], [1], [0, 0, 1, 1], [], []>} : vector<8x16xf32>, vector<16x128xf32>, vector<8x128xf32> -> vector<8x128xf32>
    %cst_23 = arith.constant dense<0.000000e+00> : vector<8x128xf32>
    %43 = tpu.matmul %16, %4, %cst_23 {dimension_numbers = #tpu.dot_dimension_numbers<[1], [0], [0], [1], [0, 0, 1, 1], [], []>} : vector<8x32xf32>, vector<32x128xf32>, vector<8x128xf32> -> vector<8x128xf32>
    %44 = arith.addf %42, %43 : vector<8x128xf32>
    %45 = arith.addf %44, %7 : vector<8x128xf32>
    %46 = arith.negf %45 : vector<8x128xf32>
    %47 = math.exp %46 : vector<8x128xf32>
    %cst_24 = arith.constant 1.000000e+00 : f32
    %48 = vector.broadcast %cst_24 : f32 to vector<8x128xf32>
    %49 = arith.addf %48, %47 : vector<8x128xf32>
    %50 = arith.divf %48, %49 : vector<8x128xf32>
    %51 = vector.extract_strided_slice %50 {offsets = [0, 0], sizes = [8, 32], strides = [1, 1]} : vector<8x128xf32> to vector<8x32xf32>
    %52 = vector.extract_strided_slice %50 {offsets = [0, 32], sizes = [8, 32], strides = [1, 1]} : vector<8x128xf32> to vector<8x32xf32>
    %53 = vector.extract_strided_slice %50 {offsets = [0, 96], sizes = [8, 32], strides = [1, 1]} : vector<8x128xf32> to vector<8x32xf32>
    %54 = vector.extract_strided_slice %45 {offsets = [0, 64], sizes = [8, 32], strides = [1, 1]} : vector<8x128xf32> to vector<8x32xf32>
    %55 = math.tanh %54 : vector<8x32xf32>
    %56 = arith.mulf %52, %18 : vector<8x32xf32>
    %57 = arith.mulf %51, %55 : vector<8x32xf32>
    %58 = arith.addf %56, %57 : vector<8x32xf32>
    %59 = math.tanh %58 : vector<8x32xf32>
    %60 = arith.mulf %53, %59 : vector<8x32xf32>
    %c0_25 = arith.constant 0 : index
    %c0_26 = arith.constant 0 : index
    %61 = vector.load %arg9[%c0_25, %c0_26] : memref<8x128xf32, #tpu.memory_space<vmem>>, vector<8x16xf32>
    tpu.vector_store %arg9[%c0_25, %c0_26], %41 {strides = array<i32>} : memref<8x128xf32, #tpu.memory_space<vmem>>, vector<8x16xf32>,
    %c0_27 = arith.constant 0 : index
    %c0_28 = arith.constant 0 : index
    %62 = vector.load %arg10[%c0_27, %c0_28] : memref<8x256xf32, #tpu.memory_space<vmem>>, vector<8x32xf32>
    tpu.vector_store %arg10[%c0_27, %c0_28], %60 {strides = array<i32>} : memref<8x256xf32, #tpu.memory_space<vmem>>, vector<8x32xf32>,
    %63 = arith.mulf %60, %10 : vector<8x32xf32>
    %64 = arith.mulf %58, %13 : vector<8x32xf32>
    %65 = arith.addf %63, %64 : vector<8x32xf32>
    %cst_29 = arith.constant dense<0.000000e+00> : vector<8xf32>
    %66 = vector.multi_reduction <add>, %65, %cst_29 [1] : vector<8x32xf32> to vector<8xf32>
    %67 = vector.shape_cast %66 : vector<8xf32> to vector<8x1xf32>
    %68 = vector.broadcast %67 : vector<8x1xf32> to vector<8x16xf32>
    %69 = arith.addf %68, %14 : vector<8x16xf32>
    %cst_30 = arith.constant dense<0xFF800000> : vector<8xf32>
    %70 = vector.multi_reduction <maximumf>, %69, %cst_30 [1] : vector<8x16xf32> to vector<8xf32>
    %71 = vector.shape_cast %70 : vector<8xf32> to vector<8x1xf32>
    %72 = vector.broadcast %71 : vector<8x1xf32> to vector<8x16xf32>
    %73 = arith.subf %69, %72 : vector<8x16xf32>
    %74 = math.exp %73 : vector<8x16xf32>
    %cst_31 = arith.constant dense<0.000000e+00> : vector<8xf32>
    %75 = vector.multi_reduction <add>, %74, %cst_31 [1] : vector<8x16xf32> to vector<8xf32>
    %76 = vector.shape_cast %75 : vector<8xf32> to vector<8x1xf32>
    %77 = tpu.reciprocal %76 {approx = true} : vector<8x1xf32> -> vector<8x1xf32>
    %78 = arith.mulf %76, %77 : vector<8x1xf32>
    %cst_32 = arith.constant 2.000000e+00 : f32
    %79 = vector.broadcast %cst_32 : f32 to vector<8x1xf32>
    %80 = arith.subf %79, %78 : vector<8x1xf32>
    %81 = arith.mulf %77, %80 : vector<8x1xf32>
    %82 = vector.broadcast %81 : vector<8x1xf32> to vector<8x16xf32>
    %83 = arith.mulf %74, %82 : vector<8x16xf32>
    %c0_33 = arith.constant 0 : index
    %c16 = arith.constant 16 : index
    %84 = vector.load %arg2[%c0_33, %c16] : memref<8x128xf32, #tpu.memory_space<vmem>>, vector<8x16xf32>
    %85 = arith.mulf %83, %84 : vector<8x16xf32>
    %cst_34 = arith.constant dense<0.000000e+00> : vector<8x128xf32>
    %86 = tpu.matmul %85, %3, %cst_34 {dimension_numbers = #tpu.dot_dimension_numbers<[1], [0], [0], [1], [0, 0, 1, 1], [], []>} : vector<8x16xf32>, vector<16x128xf32>, vector<8x128xf32> -> vector<8x128xf32>
    %cst_35 = arith.constant dense<0.000000e+00> : vector<8x128xf32>
    %87 = tpu.matmul %60, %4, %cst_35 {dimension_numbers = #tpu.dot_dimension_numbers<[1], [0], [0], [1], [0, 0, 1, 1], [], []>} : vector<8x32xf32>, vector<32x128xf32>, vector<8x128xf32> -> vector<8x128xf32>
    %88 = arith.addf %86, %87 : vector<8x128xf32>
    %89 = arith.addf %88, %7 : vector<8x128xf32>
    %90 = arith.negf %89 : vector<8x128xf32>
    %91 = math.exp %90 : vector<8x128xf32>
    %cst_36 = arith.constant 1.000000e+00 : f32
    %92 = vector.broadcast %cst_36 : f32 to vector<8x128xf32>
    %93 = arith.addf %92, %91 : vector<8x128xf32>
    %94 = arith.divf %92, %93 : vector<8x128xf32>
    %95 = vector.extract_strided_slice %94 {offsets = [0, 0], sizes = [8, 32], strides = [1, 1]} : vector<8x128xf32> to vector<8x32xf32>
    %96 = vector.extract_strided_slice %94 {offsets = [0, 32], sizes = [8, 32], strides = [1, 1]} : vector<8x128xf32> to vector<8x32xf32>
    %97 = vector.extract_strided_slice %94 {offsets = [0, 96], sizes = [8, 32], strides = [1, 1]} : vector<8x128xf32> to vector<8x32xf32>
    %98 = vector.extract_strided_slice %89 {offsets = [0, 64], sizes = [8, 32], strides = [1, 1]} : vector<8x128xf32> to vector<8x32xf32>
    %99 = math.tanh %98 : vector<8x32xf32>
    %100 = arith.mulf %96, %58 : vector<8x32xf32>
    %101 = arith.mulf %95, %99 : vector<8x32xf32>
    %102 = arith.addf %100, %101 : vector<8x32xf32>
    %103 = math.tanh %102 : vector<8x32xf32>
    %104 = arith.mulf %97, %103 : vector<8x32xf32>
    %c0_37 = arith.constant 0 : index
    %c16_38 = arith.constant 16 : index
    %105 = vector.load %arg9[%c0_37, %c16_38] : memref<8x128xf32, #tpu.memory_space<vmem>>, vector<8x16xf32>
    tpu.vector_store %arg9[%c0_37, %c16_38], %85 {strides = array<i32>} : memref<8x128xf32, #tpu.memory_space<vmem>>, vector<8x16xf32>,
    %c0_39 = arith.constant 0 : index
    %c32 = arith.constant 32 : index
    %106 = vector.load %arg10[%c0_39, %c32] : memref<8x256xf32, #tpu.memory_space<vmem>>, vector<8x32xf32>
    tpu.vector_store %arg10[%c0_39, %c32], %104 {strides = array<i32>} : memref<8x256xf32, #tpu.memory_space<vmem>>, vector<8x32xf32>,
    %107 = arith.mulf %104, %10 : vector<8x32xf32>
    %108 = arith.mulf %102, %13 : vector<8x32xf32>
    %109 = arith.addf %107, %108 : vector<8x32xf32>
    %cst_40 = arith.constant dense<0.000000e+00> : vector<8xf32>
    %110 = vector.multi_reduction <add>, %109, %cst_40 [1] : vector<8x32xf32> to vector<8xf32>
    %111 = vector.shape_cast %110 : vector<8xf32> to vector<8x1xf32>
    %112 = vector.broadcast %111 : vector<8x1xf32> to vector<8x16xf32>
    %113 = arith.addf %112, %14 : vector<8x16xf32>
    %cst_41 = arith.constant dense<0xFF800000> : vector<8xf32>
    %114 = vector.multi_reduction <maximumf>, %113, %cst_41 [1] : vector<8x16xf32> to vector<8xf32>
    %115 = vector.shape_cast %114 : vector<8xf32> to vector<8x1xf32>
    %116 = vector.broadcast %115 : vector<8x1xf32> to vector<8x16xf32>
    %117 = arith.subf %113, %116 : vector<8x16xf32>
    %118 = math.exp %117 : vector<8x16xf32>
    %cst_42 = arith.constant dense<0.000000e+00> : vector<8xf32>
    %119 = vector.multi_reduction <add>, %118, %cst_42 [1] : vector<8x16xf32> to vector<8xf32>
    %120 = vector.shape_cast %119 : vector<8xf32> to vector<8x1xf32>
    %121 = tpu.reciprocal %120 {approx = true} : vector<8x1xf32> -> vector<8x1xf32>
    %122 = arith.mulf %120, %121 : vector<8x1xf32>
    %cst_43 = arith.constant 2.000000e+00 : f32
    %123 = vector.broadcast %cst_43 : f32 to vector<8x1xf32>
    %124 = arith.subf %123, %122 : vector<8x1xf32>
    %125 = arith.mulf %121, %124 : vector<8x1xf32>
    %126 = vector.broadcast %125 : vector<8x1xf32> to vector<8x16xf32>
    %127 = arith.mulf %118, %126 : vector<8x16xf32>
    %c0_44 = arith.constant 0 : index
    %c32_45 = arith.constant 32 : index
    %128 = vector.load %arg2[%c0_44, %c32_45] : memref<8x128xf32, #tpu.memory_space<vmem>>, vector<8x16xf32>
    %129 = arith.mulf %127, %128 : vector<8x16xf32>
    %cst_46 = arith.constant dense<0.000000e+00> : vector<8x128xf32>
    %130 = tpu.matmul %129, %3, %cst_46 {dimension_numbers = #tpu.dot_dimension_numbers<[1], [0], [0], [1], [0, 0, 1, 1], [], []>} : vector<8x16xf32>, vector<16x128xf32>, vector<8x128xf32> -> vector<8x128xf32>
    %cst_47 = arith.constant dense<0.000000e+00> : vector<8x128xf32>
    %131 = tpu.matmul %104, %4, %cst_47 {dimension_numbers = #tpu.dot_dimension_numbers<[1], [0], [0], [1], [0, 0, 1, 1], [], []>} : vector<8x32xf32>, vector<32x128xf32>, vector<8x128xf32> -> vector<8x128xf32>
    %132 = arith.addf %130, %131 : vector<8x128xf32>
    %133 = arith.addf %132, %7 : vector<8x128xf32>
    %134 = arith.negf %133 : vector<8x128xf32>
    %135 = math.exp %134 : vector<8x128xf32>
    %cst_48 = arith.constant 1.000000e+00 : f32
    %136 = vector.broadcast %cst_48 : f32 to vector<8x128xf32>
    %137 = arith.addf %136, %135 : vector<8x128xf32>
    %138 = arith.divf %136, %137 : vector<8x128xf32>
    %139 = vector.extract_strided_slice %138 {offsets = [0, 0], sizes = [8, 32], strides = [1, 1]} : vector<8x128xf32> to vector<8x32xf32>
    %140 = vector.extract_strided_slice %138 {offsets = [0, 32], sizes = [8, 32], strides = [1, 1]} : vector<8x128xf32> to vector<8x32xf32>
    %141 = vector.extract_strided_slice %138 {offsets = [0, 96], sizes = [8, 32], strides = [1, 1]} : vector<8x128xf32> to vector<8x32xf32>
    %142 = vector.extract_strided_slice %133 {offsets = [0, 64], sizes = [8, 32], strides = [1, 1]} : vector<8x128xf32> to vector<8x32xf32>
    %143 = math.tanh %142 : vector<8x32xf32>
    %144 = arith.mulf %140, %102 : vector<8x32xf32>
    %145 = arith.mulf %139, %143 : vector<8x32xf32>
    %146 = arith.addf %144, %145 : vector<8x32xf32>
    %147 = math.tanh %146 : vector<8x32xf32>
    %148 = arith.mulf %141, %147 : vector<8x32xf32>
    %c0_49 = arith.constant 0 : index
    %c32_50 = arith.constant 32 : index
    %149 = vector.load %arg9[%c0_49, %c32_50] : memref<8x128xf32, #tpu.memory_space<vmem>>, vector<8x16xf32>
    tpu.vector_store %arg9[%c0_49, %c32_50], %129 {strides = array<i32>} : memref<8x128xf32, #tpu.memory_space<vmem>>, vector<8x16xf32>,
    %c0_51 = arith.constant 0 : index
    %c64 = arith.constant 64 : index
    %150 = vector.load %arg10[%c0_51, %c64] : memref<8x256xf32, #tpu.memory_space<vmem>>, vector<8x32xf32>
    tpu.vector_store %arg10[%c0_51, %c64], %148 {strides = array<i32>} : memref<8x256xf32, #tpu.memory_space<vmem>>, vector<8x32xf32>,
    %151 = arith.mulf %148, %10 : vector<8x32xf32>
    %152 = arith.mulf %146, %13 : vector<8x32xf32>
    %153 = arith.addf %151, %152 : vector<8x32xf32>
    %cst_52 = arith.constant dense<0.000000e+00> : vector<8xf32>
    %154 = vector.multi_reduction <add>, %153, %cst_52 [1] : vector<8x32xf32> to vector<8xf32>
    %155 = vector.shape_cast %154 : vector<8xf32> to vector<8x1xf32>
    %156 = vector.broadcast %155 : vector<8x1xf32> to vector<8x16xf32>
    %157 = arith.addf %156, %14 : vector<8x16xf32>
    %cst_53 = arith.constant dense<0xFF800000> : vector<8xf32>
    %158 = vector.multi_reduction <maximumf>, %157, %cst_53 [1] : vector<8x16xf32> to vector<8xf32>
    %159 = vector.shape_cast %158 : vector<8xf32> to vector<8x1xf32>
    %160 = vector.broadcast %159 : vector<8x1xf32> to vector<8x16xf32>
    %161 = arith.subf %157, %160 : vector<8x16xf32>
    %162 = math.exp %161 : vector<8x16xf32>
    %cst_54 = arith.constant dense<0.000000e+00> : vector<8xf32>
    %163 = vector.multi_reduction <add>, %162, %cst_54 [1] : vector<8x16xf32> to vector<8xf32>
    %164 = vector.shape_cast %163 : vector<8xf32> to vector<8x1xf32>
    %165 = tpu.reciprocal %164 {approx = true} : vector<8x1xf32> -> vector<8x1xf32>
    %166 = arith.mulf %164, %165 : vector<8x1xf32>
    %cst_55 = arith.constant 2.000000e+00 : f32
    %167 = vector.broadcast %cst_55 : f32 to vector<8x1xf32>
    %168 = arith.subf %167, %166 : vector<8x1xf32>
    %169 = arith.mulf %165, %168 : vector<8x1xf32>
    %170 = vector.broadcast %169 : vector<8x1xf32> to vector<8x16xf32>
    %171 = arith.mulf %162, %170 : vector<8x16xf32>
    %c0_56 = arith.constant 0 : index
    %c48 = arith.constant 48 : index
    %172 = vector.load %arg2[%c0_56, %c48] : memref<8x128xf32, #tpu.memory_space<vmem>>, vector<8x16xf32>
    %173 = arith.mulf %171, %172 : vector<8x16xf32>
    %cst_57 = arith.constant dense<0.000000e+00> : vector<8x128xf32>
    %174 = tpu.matmul %173, %3, %cst_57 {dimension_numbers = #tpu.dot_dimension_numbers<[1], [0], [0], [1], [0, 0, 1, 1], [], []>} : vector<8x16xf32>, vector<16x128xf32>, vector<8x128xf32> -> vector<8x128xf32>
    %cst_58 = arith.constant dense<0.000000e+00> : vector<8x128xf32>
    %175 = tpu.matmul %148, %4, %cst_58 {dimension_numbers = #tpu.dot_dimension_numbers<[1], [0], [0], [1], [0, 0, 1, 1], [], []>} : vector<8x32xf32>, vector<32x128xf32>, vector<8x128xf32> -> vector<8x128xf32>
    %176 = arith.addf %174, %175 : vector<8x128xf32>
    %177 = arith.addf %176, %7 : vector<8x128xf32>
    %178 = arith.negf %177 : vector<8x128xf32>
    %179 = math.exp %178 : vector<8x128xf32>
    %cst_59 = arith.constant 1.000000e+00 : f32
    %180 = vector.broadcast %cst_59 : f32 to vector<8x128xf32>
    %181 = arith.addf %180, %179 : vector<8x128xf32>
    %182 = arith.divf %180, %181 : vector<8x128xf32>
    %183 = vector.extract_strided_slice %182 {offsets = [0, 0], sizes = [8, 32], strides = [1, 1]} : vector<8x128xf32> to vector<8x32xf32>
    %184 = vector.extract_strided_slice %182 {offsets = [0, 32], sizes = [8, 32], strides = [1, 1]} : vector<8x128xf32> to vector<8x32xf32>
    %185 = vector.extract_strided_slice %182 {offsets = [0, 96], sizes = [8, 32], strides = [1, 1]} : vector<8x128xf32> to vector<8x32xf32>
    %186 = vector.extract_strided_slice %177 {offsets = [0, 64], sizes = [8, 32], strides = [1, 1]} : vector<8x128xf32> to vector<8x32xf32>
    %187 = math.tanh %186 : vector<8x32xf32>
    %188 = arith.mulf %184, %146 : vector<8x32xf32>
    %189 = arith.mulf %183, %187 : vector<8x32xf32>
    %190 = arith.addf %188, %189 : vector<8x32xf32>
    %191 = math.tanh %190 : vector<8x32xf32>
    %192 = arith.mulf %185, %191 : vector<8x32xf32>
    %c0_60 = arith.constant 0 : index
    %c48_61 = arith.constant 48 : index
    %193 = vector.load %arg9[%c0_60, %c48_61] : memref<8x128xf32, #tpu.memory_space<vmem>>, vector<8x16xf32>
    tpu.vector_store %arg9[%c0_60, %c48_61], %173 {strides = array<i32>} : memref<8x128xf32, #tpu.memory_space<vmem>>, vector<8x16xf32>,
    %c0_62 = arith.constant 0 : index
    %c96 = arith.constant 96 : index
    %194 = vector.load %arg10[%c0_62, %c96] : memref<8x256xf32, #tpu.memory_space<vmem>>, vector<8x32xf32>
    tpu.vector_store %arg10[%c0_62, %c96], %192 {strides = array<i32>} : memref<8x256xf32, #tpu.memory_space<vmem>>, vector<8x32xf32>,
    %195 = arith.mulf %192, %10 : vector<8x32xf32>
    %196 = arith.mulf %190, %13 : vector<8x32xf32>
    %197 = arith.addf %195, %196 : vector<8x32xf32>
    %cst_63 = arith.constant dense<0.000000e+00> : vector<8xf32>
    %198 = vector.multi_reduction <add>, %197, %cst_63 [1] : vector<8x32xf32> to vector<8xf32>
    %199 = vector.shape_cast %198 : vector<8xf32> to vector<8x1xf32>
    %200 = vector.broadcast %199 : vector<8x1xf32> to vector<8x16xf32>
    %201 = arith.addf %200, %14 : vector<8x16xf32>
    %cst_64 = arith.constant dense<0xFF800000> : vector<8xf32>
    %202 = vector.multi_reduction <maximumf>, %201, %cst_64 [1] : vector<8x16xf32> to vector<8xf32>
    %203 = vector.shape_cast %202 : vector<8xf32> to vector<8x1xf32>
    %204 = vector.broadcast %203 : vector<8x1xf32> to vector<8x16xf32>
    %205 = arith.subf %201, %204 : vector<8x16xf32>
    %206 = math.exp %205 : vector<8x16xf32>
    %cst_65 = arith.constant dense<0.000000e+00> : vector<8xf32>
    %207 = vector.multi_reduction <add>, %206, %cst_65 [1] : vector<8x16xf32> to vector<8xf32>
    %208 = vector.shape_cast %207 : vector<8xf32> to vector<8x1xf32>
    %209 = tpu.reciprocal %208 {approx = true} : vector<8x1xf32> -> vector<8x1xf32>
    %210 = arith.mulf %208, %209 : vector<8x1xf32>
    %cst_66 = arith.constant 2.000000e+00 : f32
    %211 = vector.broadcast %cst_66 : f32 to vector<8x1xf32>
    %212 = arith.subf %211, %210 : vector<8x1xf32>
    %213 = arith.mulf %209, %212 : vector<8x1xf32>
    %214 = vector.broadcast %213 : vector<8x1xf32> to vector<8x16xf32>
    %215 = arith.mulf %206, %214 : vector<8x16xf32>
    %c0_67 = arith.constant 0 : index
    %c64_68 = arith.constant 64 : index
    %216 = vector.load %arg2[%c0_67, %c64_68] : memref<8x128xf32, #tpu.memory_space<vmem>>, vector<8x16xf32>
    %217 = arith.mulf %215, %216 : vector<8x16xf32>
    %cst_69 = arith.constant dense<0.000000e+00> : vector<8x128xf32>
    %218 = tpu.matmul %217, %3, %cst_69 {dimension_numbers = #tpu.dot_dimension_numbers<[1], [0], [0], [1], [0, 0, 1, 1], [], []>} : vector<8x16xf32>, vector<16x128xf32>, vector<8x128xf32> -> vector<8x128xf32>
    %cst_70 = arith.constant dense<0.000000e+00> : vector<8x128xf32>
    %219 = tpu.matmul %192, %4, %cst_70 {dimension_numbers = #tpu.dot_dimension_numbers<[1], [0], [0], [1], [0, 0, 1, 1], [], []>} : vector<8x32xf32>, vector<32x128xf32>, vector<8x128xf32> -> vector<8x128xf32>
    %220 = arith.addf %218, %219 : vector<8x128xf32>
    %221 = arith.addf %220, %7 : vector<8x128xf32>
    %222 = arith.negf %221 : vector<8x128xf32>
    %223 = math.exp %222 : vector<8x128xf32>
    %cst_71 = arith.constant 1.000000e+00 : f32
    %224 = vector.broadcast %cst_71 : f32 to vector<8x128xf32>
    %225 = arith.addf %224, %223 : vector<8x128xf32>
    %226 = arith.divf %224, %225 : vector<8x128xf32>
    %227 = vector.extract_strided_slice %226 {offsets = [0, 0], sizes = [8, 32], strides = [1, 1]} : vector<8x128xf32> to vector<8x32xf32>
    %228 = vector.extract_strided_slice %226 {offsets = [0, 32], sizes = [8, 32], strides = [1, 1]} : vector<8x128xf32> to vector<8x32xf32>
    %229 = vector.extract_strided_slice %226 {offsets = [0, 96], sizes = [8, 32], strides = [1, 1]} : vector<8x128xf32> to vector<8x32xf32>
    %230 = vector.extract_strided_slice %221 {offsets = [0, 64], sizes = [8, 32], strides = [1, 1]} : vector<8x128xf32> to vector<8x32xf32>
    %231 = math.tanh %230 : vector<8x32xf32>
    %232 = arith.mulf %228, %190 : vector<8x32xf32>
    %233 = arith.mulf %227, %231 : vector<8x32xf32>
    %234 = arith.addf %232, %233 : vector<8x32xf32>
    %235 = math.tanh %234 : vector<8x32xf32>
    %236 = arith.mulf %229, %235 : vector<8x32xf32>
    %c0_72 = arith.constant 0 : index
    %c64_73 = arith.constant 64 : index
    %237 = vector.load %arg9[%c0_72, %c64_73] : memref<8x128xf32, #tpu.memory_space<vmem>>, vector<8x16xf32>
    tpu.vector_store %arg9[%c0_72, %c64_73], %217 {strides = array<i32>} : memref<8x128xf32, #tpu.memory_space<vmem>>, vector<8x16xf32>,
    %c0_74 = arith.constant 0 : index
    %c128 = arith.constant 128 : index
    %238 = vector.load %arg10[%c0_74, %c128] : memref<8x256xf32, #tpu.memory_space<vmem>>, vector<8x32xf32>
    tpu.vector_store %arg10[%c0_74, %c128], %236 {strides = array<i32>} : memref<8x256xf32, #tpu.memory_space<vmem>>, vector<8x32xf32>,
    %239 = arith.mulf %236, %10 : vector<8x32xf32>
    %240 = arith.mulf %234, %13 : vector<8x32xf32>
    %241 = arith.addf %239, %240 : vector<8x32xf32>
    %cst_75 = arith.constant dense<0.000000e+00> : vector<8xf32>
    %242 = vector.multi_reduction <add>, %241, %cst_75 [1] : vector<8x32xf32> to vector<8xf32>
    %243 = vector.shape_cast %242 : vector<8xf32> to vector<8x1xf32>
    %244 = vector.broadcast %243 : vector<8x1xf32> to vector<8x16xf32>
    %245 = arith.addf %244, %14 : vector<8x16xf32>
    %cst_76 = arith.constant dense<0xFF800000> : vector<8xf32>
    %246 = vector.multi_reduction <maximumf>, %245, %cst_76 [1] : vector<8x16xf32> to vector<8xf32>
    %247 = vector.shape_cast %246 : vector<8xf32> to vector<8x1xf32>
    %248 = vector.broadcast %247 : vector<8x1xf32> to vector<8x16xf32>
    %249 = arith.subf %245, %248 : vector<8x16xf32>
    %250 = math.exp %249 : vector<8x16xf32>
    %cst_77 = arith.constant dense<0.000000e+00> : vector<8xf32>
    %251 = vector.multi_reduction <add>, %250, %cst_77 [1] : vector<8x16xf32> to vector<8xf32>
    %252 = vector.shape_cast %251 : vector<8xf32> to vector<8x1xf32>
    %253 = tpu.reciprocal %252 {approx = true} : vector<8x1xf32> -> vector<8x1xf32>
    %254 = arith.mulf %252, %253 : vector<8x1xf32>
    %cst_78 = arith.constant 2.000000e+00 : f32
    %255 = vector.broadcast %cst_78 : f32 to vector<8x1xf32>
    %256 = arith.subf %255, %254 : vector<8x1xf32>
    %257 = arith.mulf %253, %256 : vector<8x1xf32>
    %258 = vector.broadcast %257 : vector<8x1xf32> to vector<8x16xf32>
    %259 = arith.mulf %250, %258 : vector<8x16xf32>
    %c0_79 = arith.constant 0 : index
    %c80 = arith.constant 80 : index
    %260 = vector.load %arg2[%c0_79, %c80] : memref<8x128xf32, #tpu.memory_space<vmem>>, vector<8x16xf32>
    %261 = arith.mulf %259, %260 : vector<8x16xf32>
    %cst_80 = arith.constant dense<0.000000e+00> : vector<8x128xf32>
    %262 = tpu.matmul %261, %3, %cst_80 {dimension_numbers = #tpu.dot_dimension_numbers<[1], [0], [0], [1], [0, 0, 1, 1], [], []>} : vector<8x16xf32>, vector<16x128xf32>, vector<8x128xf32> -> vector<8x128xf32>
    %cst_81 = arith.constant dense<0.000000e+00> : vector<8x128xf32>
    %263 = tpu.matmul %236, %4, %cst_81 {dimension_numbers = #tpu.dot_dimension_numbers<[1], [0], [0], [1], [0, 0, 1, 1], [], []>} : vector<8x32xf32>, vector<32x128xf32>, vector<8x128xf32> -> vector<8x128xf32>
    %264 = arith.addf %262, %263 : vector<8x128xf32>
    %265 = arith.addf %264, %7 : vector<8x128xf32>
    %266 = arith.negf %265 : vector<8x128xf32>
    %267 = math.exp %266 : vector<8x128xf32>
    %cst_82 = arith.constant 1.000000e+00 : f32
    %268 = vector.broadcast %cst_82 : f32 to vector<8x128xf32>
    %269 = arith.addf %268, %267 : vector<8x128xf32>
    %270 = arith.divf %268, %269 : vector<8x128xf32>
    %271 = vector.extract_strided_slice %270 {offsets = [0, 0], sizes = [8, 32], strides = [1, 1]} : vector<8x128xf32> to vector<8x32xf32>
    %272 = vector.extract_strided_slice %270 {offsets = [0, 32], sizes = [8, 32], strides = [1, 1]} : vector<8x128xf32> to vector<8x32xf32>
    %273 = vector.extract_strided_slice %270 {offsets = [0, 96], sizes = [8, 32], strides = [1, 1]} : vector<8x128xf32> to vector<8x32xf32>
    %274 = vector.extract_strided_slice %265 {offsets = [0, 64], sizes = [8, 32], strides = [1, 1]} : vector<8x128xf32> to vector<8x32xf32>
    %275 = math.tanh %274 : vector<8x32xf32>
    %276 = arith.mulf %272, %234 : vector<8x32xf32>
    %277 = arith.mulf %271, %275 : vector<8x32xf32>
    %278 = arith.addf %276, %277 : vector<8x32xf32>
    %279 = math.tanh %278 : vector<8x32xf32>
    %280 = arith.mulf %273, %279 : vector<8x32xf32>
    %c0_83 = arith.constant 0 : index
    %c80_84 = arith.constant 80 : index
    %281 = vector.load %arg9[%c0_83, %c80_84] : memref<8x128xf32, #tpu.memory_space<vmem>>, vector<8x16xf32>
    tpu.vector_store %arg9[%c0_83, %c80_84], %261 {strides = array<i32>} : memref<8x128xf32, #tpu.memory_space<vmem>>, vector<8x16xf32>,
    %c0_85 = arith.constant 0 : index
    %c160 = arith.constant 160 : index
    %282 = vector.load %arg10[%c0_85, %c160] : memref<8x256xf32, #tpu.memory_space<vmem>>, vector<8x32xf32>
    tpu.vector_store %arg10[%c0_85, %c160], %280 {strides = array<i32>} : memref<8x256xf32, #tpu.memory_space<vmem>>, vector<8x32xf32>,
    %283 = arith.mulf %280, %10 : vector<8x32xf32>
    %284 = arith.mulf %278, %13 : vector<8x32xf32>
    %285 = arith.addf %283, %284 : vector<8x32xf32>
    %cst_86 = arith.constant dense<0.000000e+00> : vector<8xf32>
    %286 = vector.multi_reduction <add>, %285, %cst_86 [1] : vector<8x32xf32> to vector<8xf32>
    %287 = vector.shape_cast %286 : vector<8xf32> to vector<8x1xf32>
    %288 = vector.broadcast %287 : vector<8x1xf32> to vector<8x16xf32>
    %289 = arith.addf %288, %14 : vector<8x16xf32>
    %cst_87 = arith.constant dense<0xFF800000> : vector<8xf32>
    %290 = vector.multi_reduction <maximumf>, %289, %cst_87 [1] : vector<8x16xf32> to vector<8xf32>
    %291 = vector.shape_cast %290 : vector<8xf32> to vector<8x1xf32>
    %292 = vector.broadcast %291 : vector<8x1xf32> to vector<8x16xf32>
    %293 = arith.subf %289, %292 : vector<8x16xf32>
    %294 = math.exp %293 : vector<8x16xf32>
    %cst_88 = arith.constant dense<0.000000e+00> : vector<8xf32>
    %295 = vector.multi_reduction <add>, %294, %cst_88 [1] : vector<8x16xf32> to vector<8xf32>
    %296 = vector.shape_cast %295 : vector<8xf32> to vector<8x1xf32>
    %297 = tpu.reciprocal %296 {approx = true} : vector<8x1xf32> -> vector<8x1xf32>
    %298 = arith.mulf %296, %297 : vector<8x1xf32>
    %cst_89 = arith.constant 2.000000e+00 : f32
    %299 = vector.broadcast %cst_89 : f32 to vector<8x1xf32>
    %300 = arith.subf %299, %298 : vector<8x1xf32>
    %301 = arith.mulf %297, %300 : vector<8x1xf32>
    %302 = vector.broadcast %301 : vector<8x1xf32> to vector<8x16xf32>
    %303 = arith.mulf %294, %302 : vector<8x16xf32>
    %c0_90 = arith.constant 0 : index
    %c96_91 = arith.constant 96 : index
    %304 = vector.load %arg2[%c0_90, %c96_91] : memref<8x128xf32, #tpu.memory_space<vmem>>, vector<8x16xf32>
    %305 = arith.mulf %303, %304 : vector<8x16xf32>
    %cst_92 = arith.constant dense<0.000000e+00> : vector<8x128xf32>
    %306 = tpu.matmul %305, %3, %cst_92 {dimension_numbers = #tpu.dot_dimension_numbers<[1], [0], [0], [1], [0, 0, 1, 1], [], []>} : vector<8x16xf32>, vector<16x128xf32>, vector<8x128xf32> -> vector<8x128xf32>
    %cst_93 = arith.constant dense<0.000000e+00> : vector<8x128xf32>
    %307 = tpu.matmul %280, %4, %cst_93 {dimension_numbers = #tpu.dot_dimension_numbers<[1], [0], [0], [1], [0, 0, 1, 1], [], []>} : vector<8x32xf32>, vector<32x128xf32>, vector<8x128xf32> -> vector<8x128xf32>
    %308 = arith.addf %306, %307 : vector<8x128xf32>
    %309 = arith.addf %308, %7 : vector<8x128xf32>
    %310 = arith.negf %309 : vector<8x128xf32>
    %311 = math.exp %310 : vector<8x128xf32>
    %cst_94 = arith.constant 1.000000e+00 : f32
    %312 = vector.broadcast %cst_94 : f32 to vector<8x128xf32>
    %313 = arith.addf %312, %311 : vector<8x128xf32>
    %314 = arith.divf %312, %313 : vector<8x128xf32>
    %315 = vector.extract_strided_slice %314 {offsets = [0, 0], sizes = [8, 32], strides = [1, 1]} : vector<8x128xf32> to vector<8x32xf32>
    %316 = vector.extract_strided_slice %314 {offsets = [0, 32], sizes = [8, 32], strides = [1, 1]} : vector<8x128xf32> to vector<8x32xf32>
    %317 = vector.extract_strided_slice %314 {offsets = [0, 96], sizes = [8, 32], strides = [1, 1]} : vector<8x128xf32> to vector<8x32xf32>
    %318 = vector.extract_strided_slice %309 {offsets = [0, 64], sizes = [8, 32], strides = [1, 1]} : vector<8x128xf32> to vector<8x32xf32>
    %319 = math.tanh %318 : vector<8x32xf32>
    %320 = arith.mulf %316, %278 : vector<8x32xf32>
    %321 = arith.mulf %315, %319 : vector<8x32xf32>
    %322 = arith.addf %320, %321 : vector<8x32xf32>
    %323 = math.tanh %322 : vector<8x32xf32>
    %324 = arith.mulf %317, %323 : vector<8x32xf32>
    %c0_95 = arith.constant 0 : index
    %c96_96 = arith.constant 96 : index
    %325 = vector.load %arg9[%c0_95, %c96_96] : memref<8x128xf32, #tpu.memory_space<vmem>>, vector<8x16xf32>
    tpu.vector_store %arg9[%c0_95, %c96_96], %305 {strides = array<i32>} : memref<8x128xf32, #tpu.memory_space<vmem>>, vector<8x16xf32>,
    %c0_97 = arith.constant 0 : index
    %c192 = arith.constant 192 : index
    %326 = vector.load %arg10[%c0_97, %c192] : memref<8x256xf32, #tpu.memory_space<vmem>>, vector<8x32xf32>
    tpu.vector_store %arg10[%c0_97, %c192], %324 {strides = array<i32>} : memref<8x256xf32, #tpu.memory_space<vmem>>, vector<8x32xf32>,
    %327 = arith.mulf %324, %10 : vector<8x32xf32>
    %328 = arith.mulf %322, %13 : vector<8x32xf32>
    %329 = arith.addf %327, %328 : vector<8x32xf32>
    %cst_98 = arith.constant dense<0.000000e+00> : vector<8xf32>
    %330 = vector.multi_reduction <add>, %329, %cst_98 [1] : vector<8x32xf32> to vector<8xf32>
    %331 = vector.shape_cast %330 : vector<8xf32> to vector<8x1xf32>
    %332 = vector.broadcast %331 : vector<8x1xf32> to vector<8x16xf32>
    %333 = arith.addf %332, %14 : vector<8x16xf32>
    %cst_99 = arith.constant dense<0xFF800000> : vector<8xf32>
    %334 = vector.multi_reduction <maximumf>, %333, %cst_99 [1] : vector<8x16xf32> to vector<8xf32>
    %335 = vector.shape_cast %334 : vector<8xf32> to vector<8x1xf32>
    %336 = vector.broadcast %335 : vector<8x1xf32> to vector<8x16xf32>
    %337 = arith.subf %333, %336 : vector<8x16xf32>
    %338 = math.exp %337 : vector<8x16xf32>
    %cst_100 = arith.constant dense<0.000000e+00> : vector<8xf32>
    %339 = vector.multi_reduction <add>, %338, %cst_100 [1] : vector<8x16xf32> to vector<8xf32>
    %340 = vector.shape_cast %339 : vector<8xf32> to vector<8x1xf32>
    %341 = tpu.reciprocal %340 {approx = true} : vector<8x1xf32> -> vector<8x1xf32>
    %342 = arith.mulf %340, %341 : vector<8x1xf32>
    %cst_101 = arith.constant 2.000000e+00 : f32
    %343 = vector.broadcast %cst_101 : f32 to vector<8x1xf32>
    %344 = arith.subf %343, %342 : vector<8x1xf32>
    %345 = arith.mulf %341, %344 : vector<8x1xf32>
    %346 = vector.broadcast %345 : vector<8x1xf32> to vector<8x16xf32>
    %347 = arith.mulf %338, %346 : vector<8x16xf32>
    %c0_102 = arith.constant 0 : index
    %c112 = arith.constant 112 : index
    %348 = vector.load %arg2[%c0_102, %c112] : memref<8x128xf32, #tpu.memory_space<vmem>>, vector<8x16xf32>
    %349 = arith.mulf %347, %348 : vector<8x16xf32>
    %cst_103 = arith.constant dense<0.000000e+00> : vector<8x128xf32>
    %350 = tpu.matmul %349, %3, %cst_103 {dimension_numbers = #tpu.dot_dimension_numbers<[1], [0], [0], [1], [0, 0, 1, 1], [], []>} : vector<8x16xf32>, vector<16x128xf32>, vector<8x128xf32> -> vector<8x128xf32>
    %cst_104 = arith.constant dense<0.000000e+00> : vector<8x128xf32>
    %351 = tpu.matmul %324, %4, %cst_104 {dimension_numbers = #tpu.dot_dimension_numbers<[1], [0], [0], [1], [0, 0, 1, 1], [], []>} : vector<8x32xf32>, vector<32x128xf32>, vector<8x128xf32> -> vector<8x128xf32>
    %352 = arith.addf %350, %351 : vector<8x128xf32>
    %353 = arith.addf %352, %7 : vector<8x128xf32>
    %354 = arith.negf %353 : vector<8x128xf32>
    %355 = math.exp %354 : vector<8x128xf32>
    %cst_105 = arith.constant 1.000000e+00 : f32
    %356 = vector.broadcast %cst_105 : f32 to vector<8x128xf32>
    %357 = arith.addf %356, %355 : vector<8x128xf32>
    %358 = arith.divf %356, %357 : vector<8x128xf32>
    %359 = vector.extract_strided_slice %358 {offsets = [0, 0], sizes = [8, 32], strides = [1, 1]} : vector<8x128xf32> to vector<8x32xf32>
    %360 = vector.extract_strided_slice %358 {offsets = [0, 32], sizes = [8, 32], strides = [1, 1]} : vector<8x128xf32> to vector<8x32xf32>
    %361 = vector.extract_strided_slice %358 {offsets = [0, 96], sizes = [8, 32], strides = [1, 1]} : vector<8x128xf32> to vector<8x32xf32>
    %362 = vector.extract_strided_slice %353 {offsets = [0, 64], sizes = [8, 32], strides = [1, 1]} : vector<8x128xf32> to vector<8x32xf32>
    %363 = math.tanh %362 : vector<8x32xf32>
    %364 = arith.mulf %360, %322 : vector<8x32xf32>
    %365 = arith.mulf %359, %363 : vector<8x32xf32>
    %366 = arith.addf %364, %365 : vector<8x32xf32>
    %367 = math.tanh %366 : vector<8x32xf32>
    %368 = arith.mulf %361, %367 : vector<8x32xf32>
    %c0_106 = arith.constant 0 : index
    %c112_107 = arith.constant 112 : index
    %369 = vector.load %arg9[%c0_106, %c112_107] : memref<8x128xf32, #tpu.memory_space<vmem>>, vector<8x16xf32>
    tpu.vector_store %arg9[%c0_106, %c112_107], %349 {strides = array<i32>} : memref<8x128xf32, #tpu.memory_space<vmem>>, vector<8x16xf32>,
    %c0_108 = arith.constant 0 : index
    %c224 = arith.constant 224 : index
    %370 = vector.load %arg10[%c0_108, %c224] : memref<8x256xf32, #tpu.memory_space<vmem>>, vector<8x32xf32>
    tpu.vector_store %arg10[%c0_108, %c224], %368 {strides = array<i32>} : memref<8x256xf32, #tpu.memory_space<vmem>>, vector<8x32xf32>,
    %c1_i32 = arith.constant 1 : i32
    %371 = arith.addi %arg1, %c1_i32 : i32
    %c1_i32_109 = arith.constant 1 : i32
    %372 = arith.cmpi slt, %371, %c1_i32_109 : i32
    %373 = arith.extui %372 : i1 to i32
    %c0_i32_110 = arith.constant 0 : i32
    %374 = arith.cmpi ne, %373, %c0_i32_110 : i32
    scf.if %374 {
      %c0_111 = arith.constant 0 : index
      %c0_112 = arith.constant 0 : index
      %c0_113 = arith.constant 0 : index
      %375 = vector.load %arg11[%c0_111, %c0_112, %c0_113] : memref<2x8x32xf32, #tpu.memory_space<vmem>>, vector<1x8x32xf32>
      %376 = vector.shape_cast %375 : vector<1x8x32xf32> to vector<8x32xf32>
      %377 = vector.shape_cast %368 : vector<8x32xf32> to vector<1x8x32xf32>
      tpu.vector_store %arg11[%c0_111, %c0_112, %c0_113], %377 {strides = array<i32>} : memref<2x8x32xf32, #tpu.memory_space<vmem>>, vector<1x8x32xf32>,
      %c1_114 = arith.constant 1 : index
      %c0_115 = arith.constant 0 : index
      %c0_116 = arith.constant 0 : index
      %378 = vector.load %arg11[%c1_114, %c0_115, %c0_116] : memref<2x8x32xf32, #tpu.memory_space<vmem>>, vector<1x8x32xf32>
      %379 = vector.shape_cast %378 : vector<1x8x32xf32> to vector<8x32xf32>
      %380 = vector.shape_cast %366 : vector<8x32xf32> to vector<1x8x32xf32>
      tpu.vector_store %arg11[%c1_114, %c0_115, %c0_116], %380 {strides = array<i32>} : memref<2x8x32xf32, #tpu.memory_space<vmem>>, vector<1x8x32xf32>,
    } else {
    }
    return
  }
  func.func @transform_0(%arg0: i32, %arg1: i32) -> (i32, i32) {
    %c0_i32 = arith.constant 0 : i32
    return %arg0, %arg1 : i32, i32
  }
  func.func @transform_1(%arg0: i32, %arg1: i32) -> (i32, i32) {
    %c0_i32 = arith.constant 0 : i32
    %c0_i32_0 = arith.constant 0 : i32
    return %arg0, %c0_i32 : i32, i32
  }
  func.func @transform_2(%arg0: i32, %arg1: i32) -> (i32, i32) {
    %c0_i32 = arith.constant 0 : i32
    %c0_i32_0 = arith.constant 0 : i32
    %c0_i32_1 = arith.constant 0 : i32
    return %c0_i32, %c0_i32_0 : i32, i32
  }
  func.func @transform_3(%arg0: i32, %arg1: i32) -> (i32, i32) {
    %c0_i32 = arith.constant 0 : i32
    %c0_i32_0 = arith.constant 0 : i32
    %c0_i32_1 = arith.constant 0 : i32
    return %c0_i32, %c0_i32_0 : i32, i32
  }
  func.func @transform_4(%arg0: i32, %arg1: i32) -> (i32, i32) {
    %c0_i32 = arith.constant 0 : i32
    %c0_i32_0 = arith.constant 0 : i32
    %c0_i32_1 = arith.constant 0 : i32
    return %c0_i32, %c0_i32_0 : i32, i32
  }
  func.func @transform_5(%arg0: i32, %arg1: i32) -> (i32, i32) {
    %c0_i32 = arith.constant 0 : i32
    %c0_i32_0 = arith.constant 0 : i32
    %c0_i32_1 = arith.constant 0 : i32
    return %c0_i32, %c0_i32_0 : i32, i32
  }
  func.func @transform_6(%arg0: i32, %arg1: i32) -> (i32, i32) {
    %c0_i32 = arith.constant 0 : i32
    %c0_i32_0 = arith.constant 0 : i32
    %c0_i32_1 = arith.constant 0 : i32
    return %c0_i32, %c0_i32_0 : i32, i32
  }
  func.func @transform_7(%arg0: i32, %arg1: i32) -> (i32, i32) {
    %c0_i32 = arith.constant 0 : i32
    return %arg0, %arg1 : i32, i32
  }
  func.func @transform_8(%arg0: i32, %arg1: i32) -> (i32, i32) {
    %c0_i32 = arith.constant 0 : i32
    return %arg0, %arg1 : i32, i32
  }
}

</mosaic_0001>

<llo_original>
// kernel: tpu_custom_call.1
$region0: #{tpu_custom_call.1}
  #allocation0 [shape = 'u32[]', space=smem, size = 0x4, offset = 0x4, fixed_abs, tag = 'smem constant byte address 0x4 - core index']
  #allocation1 [shape = 'u32[72,128]{1,0:T(1,128)}', space=vmem, size = 0x9000, scoped, tag = 'internal scratch']
  #allocation2 [shape = 'f32[2,8,32]{2,1,0:T(8,128)}', space=vmem, size = 0x2000, scoped, tag = 'scratch operand']
  %s0 = inlined_call_operand.hbm [shape: f32[16,128], index: 0, kind: input, shape index: {}]
  %s1 = inlined_call_operand.hbm [shape: f32[16,16], index: 1, kind: input, shape index: {}]
  %s2 = inlined_call_operand.hbm [shape: f32[16,128], index: 2, kind: input, shape index: {}]
  %s3 = inlined_call_operand.hbm [shape: f32[32,128], index: 3, kind: input, shape index: {}]
  %s4 = inlined_call_operand.vmem [shape: f32[1,128], index: 4, kind: input, shape index: {}]
  %s5 = inlined_call_operand.vmem [shape: f32[1,32], index: 5, kind: input, shape index: {}]
  %s6 = inlined_call_operand.vmem [shape: f32[1,32], index: 6, kind: input, shape index: {}]
  %s7 = inlined_call_operand.hbm [shape: f32[16,128], index: 7, kind: output, shape index: {0}]
  %s8 = inlined_call_operand.hbm [shape: f32[16,256], index: 8, kind: output, shape index: {1}]
  %9 = xla_tuple %s7, %s8
  %s10 = sld [smem:[#allocation0]]
  $region93: #{tpu_custom_call.1} parent=0
    _
  %s12 = ssub.s32 1, %s10
  %s13 = scalar_select 0, %s12, %s10
  $region1: #{tpu_custom_call.1} parent=0
    #allocation3 [shape = 'u8[8192]{0}', space=vmem, size = 0x2000, scoped, tag = 'input window, operand 0']
    #allocation4 [shape = 's32[2]{0}', space=sflag, size = 0x8, scoped, tag = 'scoped memory for tpu_custom_call.1']
    #allocation5 [shape = 's32[2]{0}', space=sflag, size = 0x8, scoped, tag = 'scoped memory for tpu_custom_call.1']
    #allocation6 [shape = 'u8[8192]{0}', space=vmem, size = 0x2000, scoped, tag = 'input window, operand 1']
    #allocation7 [shape = 's32[2]{0}', space=sflag, size = 0x8, scoped, tag = 'scoped memory for tpu_custom_call.1']
    #allocation8 [shape = 'u8[8192]{0}', space=vmem, size = 0x2000, scoped, tag = 'input window, operand 2, single buffered']
    #allocation9 [shape = 'u8[16384]{0}', space=vmem, size = 0x4000, scoped, tag = 'input window, operand 3, single buffered']
    #allocation10 [shape = 's32[1]{0}', space=sflag, size = 0x4, scoped, tag = 'scoped memory for tpu_custom_call.1']
    #allocation11 [shape = 'u8[8192]{0}', space=vmem, size = 0x2000, scoped, tag = 'output window, operand 0']
    #allocation12 [shape = 'u8[16384]{0}', space=vmem, size = 0x4000, scoped, tag = 'output window, operand 1']
    #allocation13 [shape = 's32[2]{0}', space=sflag, size = 0x8, scoped, tag = 'scoped memory for tpu_custom_call.1']
    %14 = vsyncpa [#allocation4], 0
    %s15 = scalar_lea.sflag [#allocation4], 1
    %16 = vsyncpa %s15, 0
    %17 = vsyncpa [#allocation7], 0
    %s18 = scalar_lea.sflag [#allocation7], 1
    %19 = vsyncpa %s18, 0
    %20 = vsyncpa [#allocation10], 0
    %21 = vsyncpa [#allocation5], 0
    %s22 = scalar_lea.sflag [#allocation5], 1
    %23 = vsyncpa %s22, 0
    %24 = vsyncpa [#allocation13], 0
    %s25 = scalar_lea.sflag [#allocation13], 1
    %26 = vsyncpa %s25, 0
    loop: start=0, step=1, limit=4
    $region2: #{tpu_custom_call.1} parent=1 // loop_pre_header
      _
    $region3: #{tpu_custom_call.1} parent=1 // loop_header
      %s28 = sphi 0, %s32
      %p29 = scmp.ge.s32.totalorder %s28, 4
      %s35 = sphi 0, %s47
      %s36 = sphi 0, %s43
      %s37 = sphi 0, %s35
      %s38 = sphi 0, %s36
      %s39 = sphi 0, %s37
      %s40 = sphi 0, %s38
      %s52 = sphi 0, %s54
      %s55 = sphi 0, %s52
      %s56 = sphi 0, %s55
      %s72 = sphi 0, %s56
      %s78 = sphi 0, %s80
      %s81 = sphi 0, %s78
      %s82 = sphi 0, %s81
      %s98 = sphi 0, %s82
      %s102 = sphi 0, %s102
      %s104 = sphi 0, %s102
      %s105 = sphi 0, %s104
      %s119 = sphi 0, %s105
      %s123 = sphi 0, %s123
      %s125 = sphi 0, %s123
      %s126 = sphi 0, %s125
      %s140 = sphi 0, %s126
      %s144 = sphi 0, %s144
      %s146 = sphi 0, %s144
      %s147 = sphi 0, %s146
      %s161 = sphi 0, %s147
      %s165 = sphi 0, %s165
      %s167 = sphi 0, %s165
      %s168 = sphi 0, %s167
      %s182 = sphi 0, %s168
      %s186 = sphi 0, %s186
      %s188 = sphi 0, %s186
      %s189 = sphi 0, %s188
      %s203 = sphi 0, %s189
      %s211 = sphi 0, %s213
      %s214 = sphi 0, %s211
      %s215 = sphi 0, %s214
      %s231 = sphi 0, %s215
      %s239 = sphi 0, %s241
      %s242 = sphi 0, %s239
      %s243 = sphi 0, %s242
      %s259 = sphi 0, %s243
    $region4: #{tpu_custom_call.1} parent=1 // loop_header_branch
      %31 = sbr.rel (%p29) target = $region8
    $region5: #{tpu_custom_call.1} parent=1 // loop_body
      %s33 = ssub.s32 %s28, 1
      %s34 = ssub.s32 %s28, 2
      %s41 = sadd.s32 1, %s36
      %p42 = scmp.ge.s32.totalorder %s41, 1
      %s43 = scalar_select %p42, 0, %s41
      %s44 = sadd.s32 1, %s35
      %s45 = scalar_select %p42, %s44, %s35
      %p46 = scmp.ge.s32.totalorder %s45, 2
      %s47 = scalar_select %p46, 0, %s45
      %s48 = ssub.s32 %s35, %s47
      %s49 = ssub.s32 %s36, %s43
      %s50 = sor.u32 %s48, %s49
      %p51 = scmp.eq.s32.totalorder %s50, 0
      %s53 = sadd.s32 %s52, 1
      %s54 = scalar_select %p51, %s52, %s53
      %p57 = pneg %p51
      %p58 = scmp.eq.s32.totalorder %s28, 1
      %p59 = por %p57, %p58
      %p60 = scmp.ne.s32.totalorder %s52, %s55
      %p61 = scmp.eq.s32.totalorder %s28, 0
      %p62 = por %p60, %p61
      %p63 = scmp.ne.s32.totalorder %s52, %s55
      %p64 = scmp.eq.s32.totalorder %s33, 1
      %p65 = por %p63, %p64
      %p66 = scmp.ne.s32.totalorder %s55, %s56
      %p67 = scmp.eq.s32.totalorder %s33, 0
      %p68 = por %p66, %p67
      %p69 = scmp.ne.s32.totalorder %s55, %s56
      %p70 = scmp.eq.s32.totalorder %s34, 1
      %p71 = por %p69, %p70
      %p73 = scmp.ne.s32.totalorder %s56, %s72
      %p74 = scmp.eq.s32.totalorder %s34, 0
      %p75 = por %p73, %p74
      %s76 = ssub.s32 %s35, %s47
      %p77 = scmp.eq.s32.totalorder %s76, 0
      %s79 = sadd.s32 %s78, 1
      %s80 = scalar_select %p77, %s78, %s79
      %p83 = pneg %p77
      %p84 = scmp.eq.s32.totalorder %s28, 1
      %p85 = por %p83, %p84
      %p86 = scmp.ne.s32.totalorder %s78, %s81
      %p87 = scmp.eq.s32.totalorder %s28, 0
      %p88 = por %p86, %p87
      %p89 = scmp.ne.s32.totalorder %s78, %s81
      %p90 = scmp.eq.s32.totalorder %s33, 1
      %p91 = por %p89, %p90
      %p92 = scmp.ne.s32.totalorder %s81, %s82
      %p93 = scmp.eq.s32.totalorder %s33, 0
      %p94 = por %p92, %p93
      %p95 = scmp.ne.s32.totalorder %s81, %s82
      %p96 = scmp.eq.s32.totalorder %s34, 1
      %p97 = por %p95, %p96
      %p99 = scmp.ne.s32.totalorder %s82, %s98
      %p100 = scmp.eq.s32.totalorder %s34, 0
      %p101 = por %p99, %p100
      %s103 = sadd.s32 %s102, 1
      %p106 = scmp.eq.s32.totalorder %s28, 1
      %p107 = scmp.ne.s32.totalorder %s102, %s104
      %p108 = scmp.eq.s32.totalorder %s28, 0
      %p109 = por %p107, %p108
      %p110 = scmp.ne.s32.totalorder %s102, %s104
      %p111 = scmp.eq.s32.totalorder %s33, 1
      %p112 = por %p110, %p111
      %p113 = scmp.ne.s32.totalorder %s104, %s105
      %p114 = scmp.eq.s32.totalorder %s33, 0
      %p115 = por %p113, %p114
      %p116 = scmp.ne.s32.totalorder %s104, %s105
      %p117 = scmp.eq.s32.totalorder %s34, 1
      %p118 = por %p116, %p117
      %p120 = scmp.ne.s32.totalorder %s105, %s119
      %p121 = scmp.eq.s32.totalorder %s34, 0
      %p122 = por %p120, %p121
      %s124 = sadd.s32 %s123, 1
      %p127 = scmp.eq.s32.totalorder %s28, 1
      %p128 = scmp.ne.s32.totalorder %s123, %s125
      %p129 = scmp.eq.s32.totalorder %s28, 0
      %p130 = por %p128, %p129
      %p131 = scmp.ne.s32.totalorder %s123, %s125
      %p132 = scmp.eq.s32.totalorder %s33, 1
      %p133 = por %p131, %p132
      %p134 = scmp.ne.s32.totalorder %s125, %s126
      %p135 = scmp.eq.s32.totalorder %s33, 0
      %p136 = por %p134, %p135
      %p137 = scmp.ne.s32.totalorder %s125, %s126
      %p138 = scmp.eq.s32.totalorder %s34, 1
      %p139 = por %p137, %p138
      %p141 = scmp.ne.s32.totalorder %s126, %s140
      %p142 = scmp.eq.s32.totalorder %s34, 0
      %p143 = por %p141, %p142
      %s145 = sadd.s32 %s144, 1
      %p148 = scmp.eq.s32.totalorder %s28, 1
      %p149 = scmp.ne.s32.totalorder %s144, %s146
      %p150 = scmp.eq.s32.totalorder %s28, 0
      %p151 = por %p149, %p150
      %p152 = scmp.ne.s32.totalorder %s144, %s146
      %p153 = scmp.eq.s32.totalorder %s33, 1
      %p154 = por %p152, %p153
      %p155 = scmp.ne.s32.totalorder %s146, %s147
      %p156 = scmp.eq.s32.totalorder %s33, 0
      %p157 = por %p155, %p156
      %p158 = scmp.ne.s32.totalorder %s146, %s147
      %p159 = scmp.eq.s32.totalorder %s34, 1
      %p160 = por %p158, %p159
      %p162 = scmp.ne.s32.totalorder %s147, %s161
      %p163 = scmp.eq.s32.totalorder %s34, 0
      %p164 = por %p162, %p163
      %s166 = sadd.s32 %s165, 1
      %p169 = scmp.eq.s32.totalorder %s28, 1
      %p170 = scmp.ne.s32.totalorder %s165, %s167
      %p171 = scmp.eq.s32.totalorder %s28, 0
      %p172 = por %p170, %p171
      %p173 = scmp.ne.s32.totalorder %s165, %s167
      %p174 = scmp.eq.s32.totalorder %s33, 1
      %p175 = por %p173, %p174
      %p176 = scmp.ne.s32.totalorder %s167, %s168
      %p177 = scmp.eq.s32.totalorder %s33, 0
      %p178 = por %p176, %p177
      %p179 = scmp.ne.s32.totalorder %s167, %s168
      %p180 = scmp.eq.s32.totalorder %s34, 1
      %p181 = por %p179, %p180
      %p183 = scmp.ne.s32.totalorder %s168, %s182
      %p184 = scmp.eq.s32.totalorder %s34, 0
      %p185 = por %p183, %p184
      %s187 = sadd.s32 %s186, 1
      %p190 = scmp.eq.s32.totalorder %s28, 1
      %p191 = scmp.ne.s32.totalorder %s186, %s188
      %p192 = scmp.eq.s32.totalorder %s28, 0
      %p193 = por %p191, %p192
      %p194 = scmp.ne.s32.totalorder %s186, %s188
      %p195 = scmp.eq.s32.totalorder %s33, 1
      %p196 = por %p194, %p195
      %p197 = scmp.ne.s32.totalorder %s188, %s189
      %p198 = scmp.eq.s32.totalorder %s33, 0
      %p199 = por %p197, %p198
      %p200 = scmp.ne.s32.totalorder %s188, %s189
      %p201 = scmp.eq.s32.totalorder %s34, 1
      %p202 = por %p200, %p201
      %p204 = scmp.ne.s32.totalorder %s189, %s203
      %p205 = scmp.eq.s32.totalorder %s34, 0
      %p206 = por %p204, %p205
      %s207 = ssub.s32 %s35, %s47
      %s208 = ssub.s32 %s36, %s43
      %s209 = sor.u32 %s207, %s208
      %p210 = scmp.eq.s32.totalorder %s209, 0
      %s212 = sadd.s32 %s211, 1
      %s213 = scalar_select %p210, %s211, %s212
      %p216 = pneg %p210
      %p217 = scmp.eq.s32.totalorder %s28, 1
      %p218 = por %p216, %p217
      %p219 = scmp.ne.s32.totalorder %s211, %s214
      %p220 = scmp.eq.s32.totalorder %s28, 0
      %p221 = por %p219, %p220
      %p222 = scmp.ne.s32.totalorder %s211, %s214
      %p223 = scmp.eq.s32.totalorder %s33, 1
      %p224 = por %p222, %p223
      %p225 = scmp.ne.s32.totalorder %s214, %s215
      %p226 = scmp.eq.s32.totalorder %s33, 0
      %p227 = por %p225, %p226
      %p228 = scmp.ne.s32.totalorder %s214, %s215
      %p229 = scmp.eq.s32.totalorder %s34, 1
      %p230 = por %p228, %p229
      %p232 = scmp.ne.s32.totalorder %s215, %s231
      %p233 = scmp.eq.s32.totalorder %s34, 0
      %p234 = por %p232, %p233
      %s235 = ssub.s32 %s35, %s47
      %s236 = ssub.s32 %s36, %s43
      %s237 = sor.u32 %s235, %s236
      %p238 = scmp.eq.s32.totalorder %s237, 0
      %s240 = sadd.s32 %s239, 1
      %s241 = scalar_select %p238, %s239, %s240
      %p244 = pneg %p238
      %p245 = scmp.eq.s32.totalorder %s28, 1
      %p246 = por %p244, %p245
      %p247 = scmp.ne.s32.totalorder %s239, %s242
      %p248 = scmp.eq.s32.totalorder %s28, 0
      %p249 = por %p247, %p248
      %p250 = scmp.ne.s32.totalorder %s239, %s242
      %p251 = scmp.eq.s32.totalorder %s33, 1
      %p252 = por %p250, %p251
      %p253 = scmp.ne.s32.totalorder %s242, %s243
      %p254 = scmp.eq.s32.totalorder %s33, 0
      %p255 = por %p253, %p254
      %p256 = scmp.ne.s32.totalorder %s242, %s243
      %p257 = scmp.eq.s32.totalorder %s34, 1
      %p258 = por %p256, %p257
      %p260 = scmp.ne.s32.totalorder %s243, %s259
      %p261 = scmp.eq.s32.totalorder %s34, 0
      %p262 = por %p260, %p261
      %p263 = scmp.le.s32.totalorder 1, %s28
      %p264 = scmp.lt.s32.totalorder %s28, 3
      %p265 = pnand %p263, %p264
      %p266 = pneg %p265
      // Predicated region
      $region9: #{tpu_custom_call.1} parent=5 // pred_check
        _
      $region10: #{tpu_custom_call.1} parent=5 // pred_check_branch
        %268 = sbr.rel (%p265) target = $region12
      $region11: #{tpu_custom_call.1} parent=5 // pred_region
        %s269 = ssub.s32 %s28, 1
        // Predicated region
        $region13: #{tpu_custom_call.1} parent=11 // pred_check
          %p270 = pneg %p115
        $region14: #{tpu_custom_call.1} parent=11 // pred_check_branch
          %272 = sbr.rel (%p270) target = $region16
        $region15: #{tpu_custom_call.1} parent=11 // pred_region
          %274 = vsyncadd [#allocation7], 0
          %s275 = sshll.u32 %s2, 4
          %s276 = int_to_ptr.hbm [resolvable:$true] %s275
          %s277 = sshll.u32 [#allocation8], 4
          %s278 = int_to_ptr.vmem [resolvable:$true] %s277
          %283 = dma.hbm_to_vmem [thread:$0]  %s276, 256, %s278, [#allocation7], 128, 128, 8
        $region16: #{tpu_custom_call.1} parent=11 // pred_fallthru
          _
        // Predicated region
        $region17: #{tpu_custom_call.1} parent=11 // pred_check
          %p284 = pneg %p136
        $region18: #{tpu_custom_call.1} parent=11 // pred_check_branch
          %286 = sbr.rel (%p284) target = $region20
        $region19: #{tpu_custom_call.1} parent=11 // pred_region
          %288 = vsyncadd [#allocation10], 0
          %s289 = sshll.u32 %s3, 4
          %s290 = int_to_ptr.hbm [resolvable:$true] %s289
          %s291 = sshll.u32 [#allocation9], 4
          %s292 = int_to_ptr.vmem [resolvable:$true] %s291
          %297 = dma.hbm_to_vmem [thread:$0]  %s290, 512, %s292, [#allocation10], 128, 128, 8
        $region20: #{tpu_custom_call.1} parent=11 // pred_fallthru
          _
        // Predicated region
        $region21: #{tpu_custom_call.1} parent=11 // pred_check
          %p298 = pneg %p157
        $region22: #{tpu_custom_call.1} parent=11 // pred_check_branch
          %300 = sbr.rel (%p298) target = $region24
        $region23: #{tpu_custom_call.1} parent=11 // pred_region
          _
        $region24: #{tpu_custom_call.1} parent=11 // pred_fallthru
          _
        // Predicated region
        $region25: #{tpu_custom_call.1} parent=11 // pred_check
          %p301 = pneg %p178
        $region26: #{tpu_custom_call.1} parent=11 // pred_check_branch
          %303 = sbr.rel (%p301) target = $region28
        $region27: #{tpu_custom_call.1} parent=11 // pred_region
          _
        $region28: #{tpu_custom_call.1} parent=11 // pred_fallthru
          _
        // Predicated region
        $region29: #{tpu_custom_call.1} parent=11 // pred_check
          %p304 = pneg %p199
        $region30: #{tpu_custom_call.1} parent=11 // pred_check_branch
          %306 = sbr.rel (%p304) target = $region32
        $region31: #{tpu_custom_call.1} parent=11 // pred_region
          _
        $region32: #{tpu_custom_call.1} parent=11 // pred_fallthru
          _
      $region12: #{tpu_custom_call.1} parent=5 // pred_fallthru
        _
      %p307 = scmp.lt.s32.totalorder %s28, 2
      // Predicated region
      $region33: #{tpu_custom_call.1} parent=5 // pred_check
        %p308 = pneg %p307
      $region34: #{tpu_custom_call.1} parent=5 // pred_check_branch
        %310 = sbr.rel (%p308) target = $region36
      $region35: #{tpu_custom_call.1} parent=5 // pred_region
        // Predicated region
        $region37: #{tpu_custom_call.1} parent=35 // pred_check
          %p311 = pneg %p62
        $region38: #{tpu_custom_call.1} parent=35 // pred_check_branch
          %313 = sbr.rel (%p311) target = $region40
        $region39: #{tpu_custom_call.1} parent=35 // pred_region
          %s314 = sand.u32 %s52, 1
          %s315 = scalar_lea.sflag [#allocation4], %s314
          %s316 = sand.u32 %s52, 1
          %s317 = smul.addr %s316, 8
          %s318 = scalar_lea.vmem [#allocation3], %s317
          %320 = vsyncadd %s315, 0
          %s321 = sadd.s32 %s36, %s35
          %s322 = smul.addr %s321, 8
          %s323 = scalar_lea.hbm %s0, %s322
          %s325 = sshll.u32 %s323, 4
          %s326 = int_to_ptr.hbm [resolvable:$true] %s325
          %s327 = sshll.u32 %s318, 4
          %s328 = int_to_ptr.vmem [resolvable:$true] %s327
          %330 = dma.hbm_to_vmem [thread:$0]  %s326, 128, %s328, %s315
        $region40: #{tpu_custom_call.1} parent=35 // pred_fallthru
          _
        // Predicated region
        $region41: #{tpu_custom_call.1} parent=35 // pred_check
          %p331 = pneg %p88
        $region42: #{tpu_custom_call.1} parent=35 // pred_check_branch
          %333 = sbr.rel (%p331) target = $region44
        $region43: #{tpu_custom_call.1} parent=35 // pred_region
          %s334 = sand.u32 %s28, 1
          %s335 = scalar_lea.sflag [#allocation7], %s334
          %s336 = sand.u32 %s78, 1
          %s337 = smul.addr %s336, 8
          %s338 = scalar_lea.vmem [#allocation6], %s337
          %340 = vsyncadd %s335, 0
          %s341 = smul.addr %s35, 8
          %s342 = scalar_lea.hbm %s1, %s341
          %s344 = sshll.u32 %s342, 4
          %s345 = int_to_ptr.hbm [resolvable:$true] %s344
          %s346 = sshll.u32 %s338, 4
          %s347 = int_to_ptr.vmem [resolvable:$true] %s346
          %349 = dma.hbm_to_vmem [thread:$0]  %s345, 128, %s347, %s335
        $region44: #{tpu_custom_call.1} parent=35 // pred_fallthru
          _
      $region36: #{tpu_custom_call.1} parent=5 // pred_fallthru
        _
      %p350 = scmp.le.s32.totalorder 1, %s28
      %p351 = scmp.lt.s32.totalorder %s28, 3
      %p352 = pnand %p350, %p351
      %p353 = pneg %p352
      // Predicated region
      $region45: #{tpu_custom_call.1} parent=5 // pred_check
        _
      $region46: #{tpu_custom_call.1} parent=5 // pred_check_branch
        %355 = sbr.rel (%p352) target = $region48
      $region47: #{tpu_custom_call.1} parent=5 // pred_region
        %s356 = ssub.s32 %s28, 1
        %s357 = sand.u32 %s55, 1
        %s358 = scalar_lea.sflag [#allocation4], %s357
        %s359 = sand.u32 %s55, 1
        %s360 = smul.addr %s359, 8
        %s361 = scalar_lea.vmem [#allocation3], %s360
        // Predicated region
        $region49: #{tpu_custom_call.1} parent=47 // pred_check
          %p362 = pneg %p68
        $region50: #{tpu_custom_call.1} parent=47 // pred_check_branch
          %364 = sbr.rel (%p362) target = $region52
        $region51: #{tpu_custom_call.1} parent=47 // pred_region
          %366 = dma.done %s358, 128
        $region52: #{tpu_custom_call.1} parent=47 // pred_fallthru
          _
        %s367 = sand.u32 %s33, 1
        %s368 = scalar_lea.sflag [#allocation7], %s367
        %s369 = sand.u32 %s81, 1
        %s370 = smul.addr %s369, 8
        %s371 = scalar_lea.vmem [#allocation6], %s370
        // Predicated region
        $region53: #{tpu_custom_call.1} parent=47 // pred_check
          %p372 = pneg %p94
        $region54: #{tpu_custom_call.1} parent=47 // pred_check_branch
          %374 = sbr.rel (%p372) target = $region56
        $region55: #{tpu_custom_call.1} parent=47 // pred_region
          %376 = dma.done %s368, 128
        $region56: #{tpu_custom_call.1} parent=47 // pred_fallthru
          _
        // Predicated region
        $region57: #{tpu_custom_call.1} parent=47 // pred_check
          %p377 = pneg %p115
        $region58: #{tpu_custom_call.1} parent=47 // pred_check_branch
          %379 = sbr.rel (%p377) target = $region60
        $region59: #{tpu_custom_call.1} parent=47 // pred_region
          %381 = dma.done [#allocation7], 256
        $region60: #{tpu_custom_call.1} parent=47 // pred_fallthru
          _
        // Predicated region
        $region61: #{tpu_custom_call.1} parent=47 // pred_check
          %p382 = pneg %p136
        $region62: #{tpu_custom_call.1} parent=47 // pred_check_branch
          %384 = sbr.rel (%p382) target = $region64
        $region63: #{tpu_custom_call.1} parent=47 // pred_region
          %386 = dma.done [#allocation10], 512
        $region64: #{tpu_custom_call.1} parent=47 // pred_fallthru
          _
        %s387 = sand.u32 %s55, 1
        %s388 = scalar_lea.sflag [#allocation4], %s387
        %s389 = sand.u32 %s55, 1
        %s390 = smul.addr %s389, 8
        %s391 = scalar_lea.vmem [#allocation3], %s390
        %p392 = pneg %p68
        %p393 = pneg %p65
        %s394 = sand.u32 %s33, 1
        %s395 = scalar_lea.sflag [#allocation7], %s394
        %s396 = sand.u32 %s81, 1
        %s397 = smul.addr %s396, 8
        %s398 = scalar_lea.vmem [#allocation6], %s397
        %p399 = pneg %p94
        %p400 = pneg %p91
        %p401 = pneg %p115
        %p402 = pneg %p112
        %p403 = pneg %p136
        %p404 = pneg %p133
        %p405 = pneg %p157
        %p406 = pneg %p154
        %p407 = pneg %p178
        %p408 = pneg %p175
        %p409 = pneg %p199
        %p410 = pneg %p196
        %p411 = pneg %p227
        %p412 = pneg %p224
        %s413 = sand.u32 %s214, 1
        %s414 = scalar_lea.sflag [#allocation5], %s413
        %s415 = sand.u32 %s214, 1
        %s416 = smul.addr %s415, 8
        %s417 = scalar_lea.vmem [#allocation11], %s416
        %p418 = pneg %p255
        %p419 = pneg %p252
        %s420 = sand.u32 %s242, 1
        %s421 = scalar_lea.sflag [#allocation13], %s420
        %s422 = sand.u32 %s242, 1
        %s423 = smul.addr %s422, 16
        %s424 = scalar_lea.vmem [#allocation12], %s423
        %s425 = smul.u32 2, %s38
        %p426 = scmp.eq.s32.totalorder %s38, 0
        // Predicated region
        $region65: #{tpu_custom_call.1} parent=47 // pred_check
          %p427 = pneg %p426
        $region66: #{tpu_custom_call.1} parent=47 // pred_check_branch
          %429 = sbr.rel (%p427) target = $region68
        $region67: #{tpu_custom_call.1} parent=47 // pred_region
          %vm430 = vcmask 261120
          %431 = vst.msk [vmem:[#allocation2] sm:$0xff] %vm430, 0.0
          %432 = vst.msk [vmem:[#allocation2 + $0x8] sm:$0xff] %vm430, 0.0
        $region68: #{tpu_custom_call.1} parent=47 // pred_fallthru
          _
        %v433 = vld [vmem:[#allocation8] sm:$0xff]
        %v434 = vld [vmem:[#allocation8 + $0x8] sm:$0xff]
        %v435 = vld [vmem:[#allocation9] sm:$0xff]
        %v436 = vld [vmem:[#allocation9 + $0x8] sm:$0xff]
        %v437 = vld [vmem:[#allocation9 + $0x10] sm:$0xff]
        %v438 = vld [vmem:[#allocation9 + $0x18] sm:$0xff]
        %v439 = vld [vmem:[%s4] sm:$0x1]
        %v441 = vperm.slane %v439, 0
        %v443 = vld [vmem:[%s5] sm:$0x1]
        %v445 = vperm.slane %v443, 0
        %v447 = vld [vmem:[%s6] sm:$0x1]
        %v449 = vperm.slane %v447, 0
        %v451 = vld [vmem:[%s371] sm:$0xff]
        %v452 = vld [vmem:[#allocation2] sm:$0xff]
        %s453 = scalar_lea.vmem [#allocation2], 8
        %v454 = vld [vmem:[%s453] sm:$0xff]
        %v455 = vmul.f32 %v452, %v445
        %v456 = vmul.f32 %v454, %v449
        %v457 = vadd.f32 %v455, %v456
        %vm458 = vcmask 261120
        %v459 = vsel %vm458, %v457, 0.0
        %460 = vadd.xlane.f32.xlu0 %v459
        %v461 = vpop.xlane.xlu0 %460
        %v462 = vadd.f32 %v461, %v451
        %vm463 = vcmask 130048
        %v464 = vsel %vm463, %v462, -inf
        %465 = vmax.xlane.f32.xlu0 %v464
        %v466 = vpop.xlane.xlu0 %465
        %v467 = vsub.f32 %v462, %v466
        %v468 = vmul.f32 %v467, 1.442695
        %v469 = vpow.pop %v468
        %v470 = vsel %vm463, %v469, 0.0
        %471 = vadd.xlane.f32.xlu0 %v470
        %v472 = vpop.xlane.xlu0 %471
        %v473 = vrcp.pop %v472
        %v474 = vmul.f32 %v472, %v473
        %v475 = vsub.f32 2.0, %v474
        %v476 = vmul.f32 %v473, %v475
        %v477 = vmul.f32 %v469, %v476
        %v478 = vld [vmem:[%s361] sm:$0xff]
        %v479 = vmul.f32 %v477, %v478
        %v481 = vsel %vm458, %v452, 0
        %483 = vmatpush.msra.mxu0 0.0
        %484 = vmatpush.msra.mxu0 0.0
        %485 = vmatpush.msra.mxu0 0.0
        %486 = vmatpush.msra.mxu0 0.0
        %487 = vmatpush.msra.mxu0 0.0
        %488 = vmatpush.msra.mxu0 0.0
        %489 = vmatpush.msra.mxu0 0.0
        %490 = vmatpush.msra.mxu0 0.0
        %491 = vmatpush.msra.mxu0 0.0
        %492 = vmatpush.msra.mxu0 0.0
        %493 = vmatpush.msra.mxu0 0.0
        %494 = vmatpush.msra.mxu0 0.0
        %495 = vmatpush.msra.mxu0 %v438
        %496 = vmatpush.msra.mxu0 %v437
        %497 = vmatpush.msra.mxu0 %v436
        %498 = vmatpush.msra.mxu0 %v435
        %499 = vmatmul.f32.gmra.mxu0 %v481
        %v500 = vpop.f32.mrf.mxu0
        %v501 = vadd.f32 0.0, %v500
        %502 = vdwg.mxu0
        %v504 = vsel %vm463, %v479, 0
        %506 = vmatpush.msra.mxu0 0.0
        %507 = vmatpush.msra.mxu0 0.0
        %508 = vmatpush.msra.mxu0 0.0
        %509 = vmatpush.msra.mxu0 0.0
        %510 = vmatpush.msra.mxu0 0.0
        %511 = vmatpush.msra.mxu0 0.0
        %512 = vmatpush.msra.mxu0 0.0
        %513 = vmatpush.msra.mxu0 0.0
        %514 = vmatpush.msra.mxu0 0.0
        %515 = vmatpush.msra.mxu0 0.0
        %516 = vmatpush.msra.mxu0 0.0
        %517 = vmatpush.msra.mxu0 0.0
        %518 = vmatpush.msra.mxu0 0.0
        %519 = vmatpush.msra.mxu0 0.0
        %520 = vmatpush.msra.mxu0 %v434
        %521 = vmatpush.msra.mxu0 %v433
        %522 = vmatmul.f32.gmra.mxu0 %v504
        %v523 = vpop.f32.mrf.mxu0
        %v524 = vadd.f32 %v501, %v523
        %525 = vdwg.mxu0
        %v526 = vadd.f32 %v524, %v441
        %v527 = vxor.u32 %v526, 2147483648
        %v528 = vmul.f32 %v527, 1.442695
        %v529 = vpow.pop %v528
        %v530 = vadd.f32 %v529, 1.0
        %v531 = vrcp.pop %v530
        %v532 = vmul.f32 %v530, %v531
        %v533 = vsub.f32 1.0, %v532
        %v534 = vmul.f32 %v531, %v533
        %v535 = vadd.f32 %v531, %v534
        %vm536 = vweird.f32 %v530
        %vm537 = vweird.f32 %v531
        %vm538 = vmor %vm536, %vm537
        %v539 = vsel %vm538, %v531, %v535
        %v540 = vand.u32 2147483647, %v530
        %vm541 = vcmp.eq.f32.partialorder %v540, 8.507059e+37
        %v542 = vand.u32 %v530, 2147483648
        %v543 = vor.u32 1.1754944e-38, %v542
        %v544 = vsel %vm541, %v543, %v539
        %v545 = vmul.f32 1.0, %v544
        %v546 = vtanh.pop %v526
        %548 = vrot.lane.b32.xlu0 %v454, 32
        %v549 = vpop.permute.xlu0 %548
        %v551 = vmul.f32 %v545, %v549
        %553 = vrot.lane.b32.xlu0 %v546, 64
        %v554 = vpop.permute.xlu0 %553
        %v556 = vmul.f32 %v545, %v554
        %558 = vrot.lane.b32.xlu0 %v556, 32
        %v559 = vpop.permute.xlu0 %558
        %v561 = vadd.f32 %v551, %v559
        %v562 = vtanh.pop %v561
        %564 = vrot.lane.b32.xlu0 %v562, 64
        %v565 = vpop.permute.xlu0 %564
        %v567 = vmul.f32 %v545, %v565
        %568 = vst.msk [vmem:[%s417] sm:$0xff] %vm463, %v479
        %570 = vrot.lane.b32.xlu0 %v567, 32
        %v571 = vpop.permute.xlu0 %570
        %573 = vst.msk [vmem:[%s424] sm:$0xff] %vm458, %v571
        %574 = vrot.lane.b32.xlu0 %v445, 96
        %v575 = vpop.permute.xlu0 %574
        %v577 = vmul.f32 %v567, %v575
        %578 = vrot.lane.b32.xlu0 %v449, 32
        %v579 = vpop.permute.xlu0 %578
        %v581 = vmul.f32 %v561, %v579
        %583 = vrot.lane.b32.xlu0 %v581, 64
        %v584 = vpop.permute.xlu0 %583
        %v586 = vadd.f32 %v577, %v584
        %588 = vrot.lane.b32.xlu0 %v586, 32
        %v589 = vpop.permute.xlu0 %588
        %v591 = vsel %vm458, %v589, 0.0
        %592 = vadd.xlane.f32.xlu0 %v591
        %v593 = vpop.xlane.xlu0 %592
        %v594 = vadd.f32 %v593, %v451
        %v595 = vsel %vm463, %v594, -inf
        %596 = vmax.xlane.f32.xlu0 %v595
        %v597 = vpop.xlane.xlu0 %596
        %v598 = vsub.f32 %v594, %v597
        %v599 = vmul.f32 %v598, 1.442695
        %v600 = vpow.pop %v599
        %v601 = vsel %vm463, %v600, 0.0
        %602 = vadd.xlane.f32.xlu0 %v601
        %v603 = vpop.xlane.xlu0 %602
        %v604 = vrcp.pop %v603
        %v605 = vmul.f32 %v603, %v604
        %v606 = vsub.f32 2.0, %v605
        %v607 = vmul.f32 %v604, %v606
        %v608 = vmul.f32 %v600, %v607
        %v609 = vld [vmem:[%s361] sm:$0xff]
        %611 = vrot.lane.b32.xlu0 %v609, 112
        %v612 = vpop.permute.xlu0 %611
        %v614 = vmul.f32 %v608, %v612
        %v615 = vsel %vm458, %v571, 0
        %617 = vmatpush.msra.mxu0 0.0
        %618 = vmatpush.msra.mxu0 0.0
        %619 = vmatpush.msra.mxu0 0.0
        %620 = vmatpush.msra.mxu0 0.0
        %621 = vmatpush.msra.mxu0 0.0
        %622 = vmatpush.msra.mxu0 0.0
        %623 = vmatpush.msra.mxu0 0.0
        %624 = vmatpush.msra.mxu0 0.0
        %625 = vmatpush.msra.mxu0 0.0
        %626 = vmatpush.msra.mxu0 0.0
        %627 = vmatpush.msra.mxu0 0.0
        %628 = vmatpush.msra.mxu0 0.0
        %629 = vmatpush.msra.mxu0 %v438
        %630 = vmatpush.msra.mxu0 %v437
        %631 = vmatpush.msra.mxu0 %v436
        %632 = vmatpush.msra.mxu0 %v435
        %633 = vmatmul.f32.gmra.mxu0 %v615
        %v634 = vpop.f32.mrf.mxu0
        %v635 = vadd.f32 0.0, %v634
        %636 = vdwg.mxu0
        %v638 = vsel %vm463, %v614, 0
        %640 = vmatpush.msra.mxu0 0.0
        %641 = vmatpush.msra.mxu0 0.0
        %642 = vmatpush.msra.mxu0 0.0
        %643 = vmatpush.msra.mxu0 0.0
        %644 = vmatpush.msra.mxu0 0.0
        %645 = vmatpush.msra.mxu0 0.0
        %646 = vmatpush.msra.mxu0 0.0
        %647 = vmatpush.msra.mxu0 0.0
        %648 = vmatpush.msra.mxu0 0.0
        %649 = vmatpush.msra.mxu0 0.0
        %650 = vmatpush.msra.mxu0 0.0
        %651 = vmatpush.msra.mxu0 0.0
        %652 = vmatpush.msra.mxu0 0.0
        %653 = vmatpush.msra.mxu0 0.0
        %654 = vmatpush.msra.mxu0 %v434
        %655 = vmatpush.msra.mxu0 %v433
        %656 = vmatmul.f32.gmra.mxu0 %v638
        %v657 = vpop.f32.mrf.mxu0
        %v658 = vadd.f32 %v635, %v657
        %659 = vdwg.mxu0
        %v660 = vadd.f32 %v658, %v441
        %v661 = vxor.u32 %v660, 2147483648
        %v662 = vmul.f32 %v661, 1.442695
        %v663 = vpow.pop %v662
        %v664 = vadd.f32 %v663, 1.0
        %v665 = vrcp.pop %v664
        %v666 = vmul.f32 %v664, %v665
        %v667 = vsub.f32 1.0, %v666
        %v668 = vmul.f32 %v665, %v667
        %v669 = vadd.f32 %v665, %v668
        %vm670 = vweird.f32 %v664
        %vm671 = vweird.f32 %v665
        %vm672 = vmor %vm670, %vm671
        %v673 = vsel %vm672, %v665, %v669
        %v674 = vand.u32 2147483647, %v664
        %vm675 = vcmp.eq.f32.partialorder %v674, 8.507059e+37
        %v676 = vand.u32 %v664, 2147483648
        %v677 = vor.u32 1.1754944e-38, %v676
        %v678 = vsel %vm675, %v677, %v673
        %v679 = vmul.f32 1.0, %v678
        %v680 = vtanh.pop %v660
        %v681 = vmul.f32 %v679, %v561
        %683 = vrot.lane.b32.xlu0 %v680, 64
        %v684 = vpop.permute.xlu0 %683
        %v686 = vmul.f32 %v679, %v684
        %688 = vrot.lane.b32.xlu0 %v686, 32
        %v689 = vpop.permute.xlu0 %688
        %v691 = vadd.f32 %v681, %v689
        %v692 = vtanh.pop %v691
        %694 = vrot.lane.b32.xlu0 %v692, 64
        %v695 = vpop.permute.xlu0 %694
        %v697 = vmul.f32 %v679, %v695
        %698 = vrot.lane.b32.xlu0 %v614, 16
        %v699 = vpop.permute.xlu0 %698
        %vm701 = vcmask 261248
        %702 = vst.msk [vmem:[%s417] sm:$0xff] %vm701, %v699
        %704 = vrot.lane.b32.xlu0 %v697, 64
        %v705 = vpop.permute.xlu0 %704
        %vm707 = vcmask 523520
        %708 = vst.msk [vmem:[%s424] sm:$0xff] %vm707, %v705
        %v709 = vmul.f32 %v697, %v575
        %v710 = vmul.f32 %v691, %v579
        %712 = vrot.lane.b32.xlu0 %v710, 64
        %v713 = vpop.permute.xlu0 %712
        %v715 = vadd.f32 %v709, %v713
        %717 = vrot.lane.b32.xlu0 %v715, 32
        %v718 = vpop.permute.xlu0 %717
        %v720 = vsel %vm458, %v718, 0.0
        %721 = vadd.xlane.f32.xlu0 %v720
        %v722 = vpop.xlane.xlu0 %721
        %v723 = vadd.f32 %v722, %v451
        %v724 = vsel %vm463, %v723, -inf
        %725 = vmax.xlane.f32.xlu0 %v724
        %v726 = vpop.xlane.xlu0 %725
        %v727 = vsub.f32 %v723, %v726
        %v728 = vmul.f32 %v727, 1.442695
        %v729 = vpow.pop %v728
        %v730 = vsel %vm463, %v729, 0.0
        %731 = vadd.xlane.f32.xlu0 %v730
        %v732 = vpop.xlane.xlu0 %731
        %v733 = vrcp.pop %v732
        %v734 = vmul.f32 %v732, %v733
        %v735 = vsub.f32 2.0, %v734
        %v736 = vmul.f32 %v733, %v735
        %v737 = vmul.f32 %v729, %v736
        %v738 = vld [vmem:[%s361] sm:$0xff]
        %740 = vrot.lane.b32.xlu0 %v738, 96
        %v741 = vpop.permute.xlu0 %740
        %v743 = vmul.f32 %v737, %v741
        %744 = vrot.lane.b32.xlu0 %v697, 32
        %v745 = vpop.permute.xlu0 %744
        %v746 = vsel %vm458, %v745, 0
        %748 = vmatpush.msra.mxu0 0.0
        %749 = vmatpush.msra.mxu0 0.0
        %750 = vmatpush.msra.mxu0 0.0
        %751 = vmatpush.msra.mxu0 0.0
        %752 = vmatpush.msra.mxu0 0.0
        %753 = vmatpush.msra.mxu0 0.0
        %754 = vmatpush.msra.mxu0 0.0
        %755 = vmatpush.msra.mxu0 0.0
        %756 = vmatpush.msra.mxu0 0.0
        %757 = vmatpush.msra.mxu0 0.0
        %758 = vmatpush.msra.mxu0 0.0
        %759 = vmatpush.msra.mxu0 0.0
        %760 = vmatpush.msra.mxu0 %v438
        %761 = vmatpush.msra.mxu0 %v437
        %762 = vmatpush.msra.mxu0 %v436
        %763 = vmatpush.msra.mxu0 %v435
        %764 = vmatmul.f32.gmra.mxu0 %v746
        %v765 = vpop.f32.mrf.mxu0
        %v766 = vadd.f32 0.0, %v765
        %767 = vdwg.mxu0
        %v769 = vsel %vm463, %v743, 0
        %771 = vmatpush.msra.mxu0 0.0
        %772 = vmatpush.msra.mxu0 0.0
        %773 = vmatpush.msra.mxu0 0.0
        %774 = vmatpush.msra.mxu0 0.0
        %775 = vmatpush.msra.mxu0 0.0
        %776 = vmatpush.msra.mxu0 0.0
        %777 = vmatpush.msra.mxu0 0.0
        %778 = vmatpush.msra.mxu0 0.0
        %779 = vmatpush.msra.mxu0 0.0
        %780 = vmatpush.msra.mxu0 0.0
        %781 = vmatpush.msra.mxu0 0.0
        %782 = vmatpush.msra.mxu0 0.0
        %783 = vmatpush.msra.mxu0 0.0
        %784 = vmatpush.msra.mxu0 0.0
        %785 = vmatpush.msra.mxu0 %v434
        %786 = vmatpush.msra.mxu0 %v433
        %787 = vmatmul.f32.gmra.mxu0 %v769
        %v788 = vpop.f32.mrf.mxu0
        %v789 = vadd.f32 %v766, %v788
        %790 = vdwg.mxu0
        %v791 = vadd.f32 %v789, %v441
        %v792 = vxor.u32 %v791, 2147483648
        %v793 = vmul.f32 %v792, 1.442695
        %v794 = vpow.pop %v793
        %v795 = vadd.f32 %v794, 1.0
        %v796 = vrcp.pop %v795
        %v797 = vmul.f32 %v795, %v796
        %v798 = vsub.f32 1.0, %v797
        %v799 = vmul.f32 %v796, %v798
        %v800 = vadd.f32 %v796, %v799
        %vm801 = vweird.f32 %v795
        %vm802 = vweird.f32 %v796
        %vm803 = vmor %vm801, %vm802
        %v804 = vsel %vm803, %v796, %v800
        %v805 = vand.u32 2147483647, %v795
        %vm806 = vcmp.eq.f32.partialorder %v805, 8.507059e+37
        %v807 = vand.u32 %v795, 2147483648
        %v808 = vor.u32 1.1754944e-38, %v807
        %v809 = vsel %vm806, %v808, %v804
        %v810 = vmul.f32 1.0, %v809
        %v811 = vtanh.pop %v791
        %v812 = vmul.f32 %v810, %v691
        %814 = vrot.lane.b32.xlu0 %v811, 64
        %v815 = vpop.permute.xlu0 %814
        %v817 = vmul.f32 %v810, %v815
        %819 = vrot.lane.b32.xlu0 %v817, 32
        %v820 = vpop.permute.xlu0 %819
        %v822 = vadd.f32 %v812, %v820
        %v823 = vtanh.pop %v822
        %825 = vrot.lane.b32.xlu0 %v823, 64
        %v826 = vpop.permute.xlu0 %825
        %v828 = vmul.f32 %v810, %v826
        %829 = vrot.lane.b32.xlu0 %v743, 32
        %v830 = vpop.permute.xlu0 %829
        %vm832 = vcmask 392448
        %833 = vst.msk [vmem:[%s417] sm:$0xff] %vm832, %v830
        %835 = vrot.lane.b32.xlu0 %v828, 96
        %v836 = vpop.permute.xlu0 %835
        %vm838 = vcmask 785920
        %839 = vst.msk [vmem:[%s424] sm:$0xff] %vm838, %v836
        %v840 = vmul.f32 %v828, %v575
        %v841 = vmul.f32 %v822, %v579
        %843 = vrot.lane.b32.xlu0 %v841, 64
        %v844 = vpop.permute.xlu0 %843
        %v846 = vadd.f32 %v840, %v844
        %848 = vrot.lane.b32.xlu0 %v846, 32
        %v849 = vpop.permute.xlu0 %848
        %v851 = vsel %vm458, %v849, 0.0
        %852 = vadd.xlane.f32.xlu0 %v851
        %v853 = vpop.xlane.xlu0 %852
        %v854 = vadd.f32 %v853, %v451
        %v855 = vsel %vm463, %v854, -inf
        %856 = vmax.xlane.f32.xlu0 %v855
        %v857 = vpop.xlane.xlu0 %856
        %v858 = vsub.f32 %v854, %v857
        %v859 = vmul.f32 %v858, 1.442695
        %v860 = vpow.pop %v859
        %v861 = vsel %vm463, %v860, 0.0
        %862 = vadd.xlane.f32.xlu0 %v861
        %v863 = vpop.xlane.xlu0 %862
        %v864 = vrcp.pop %v863
        %v865 = vmul.f32 %v863, %v864
        %v866 = vsub.f32 2.0, %v865
        %v867 = vmul.f32 %v864, %v866
        %v868 = vmul.f32 %v860, %v867
        %v869 = vld [vmem:[%s361] sm:$0xff]
        %871 = vrot.lane.b32.xlu0 %v869, 80
        %v872 = vpop.permute.xlu0 %871
        %v874 = vmul.f32 %v868, %v872
        %875 = vrot.lane.b32.xlu0 %v828, 32
        %v876 = vpop.permute.xlu0 %875
        %v877 = vsel %vm458, %v876, 0
        %879 = vmatpush.msra.mxu0 0.0
        %880 = vmatpush.msra.mxu0 0.0
        %881 = vmatpush.msra.mxu0 0.0
        %882 = vmatpush.msra.mxu0 0.0
        %883 = vmatpush.msra.mxu0 0.0
        %884 = vmatpush.msra.mxu0 0.0
        %885 = vmatpush.msra.mxu0 0.0
        %886 = vmatpush.msra.mxu0 0.0
        %887 = vmatpush.msra.mxu0 0.0
        %888 = vmatpush.msra.mxu0 0.0
        %889 = vmatpush.msra.mxu0 0.0
        %890 = vmatpush.msra.mxu0 0.0
        %891 = vmatpush.msra.mxu0 %v438
        %892 = vmatpush.msra.mxu0 %v437
        %893 = vmatpush.msra.mxu0 %v436
        %894 = vmatpush.msra.mxu0 %v435
        %895 = vmatmul.f32.gmra.mxu0 %v877
        %v896 = vpop.f32.mrf.mxu0
        %v897 = vadd.f32 0.0, %v896
        %898 = vdwg.mxu0
        %v900 = vsel %vm463, %v874, 0
        %902 = vmatpush.msra.mxu0 0.0
        %903 = vmatpush.msra.mxu0 0.0
        %904 = vmatpush.msra.mxu0 0.0
        %905 = vmatpush.msra.mxu0 0.0
        %906 = vmatpush.msra.mxu0 0.0
        %907 = vmatpush.msra.mxu0 0.0
        %908 = vmatpush.msra.mxu0 0.0
        %909 = vmatpush.msra.mxu0 0.0
        %910 = vmatpush.msra.mxu0 0.0
        %911 = vmatpush.msra.mxu0 0.0
        %912 = vmatpush.msra.mxu0 0.0
        %913 = vmatpush.msra.mxu0 0.0
        %914 = vmatpush.msra.mxu0 0.0
        %915 = vmatpush.msra.mxu0 0.0
        %916 = vmatpush.msra.mxu0 %v434
        %917 = vmatpush.msra.mxu0 %v433
        %918 = vmatmul.f32.gmra.mxu0 %v900
        %v919 = vpop.f32.mrf.mxu0
        %v920 = vadd.f32 %v897, %v919
        %921 = vdwg.mxu0
        %v922 = vadd.f32 %v920, %v441
        %v923 = vxor.u32 %v922, 2147483648
        %v924 = vmul.f32 %v923, 1.442695
        %v925 = vpow.pop %v924
        %v926 = vadd.f32 %v925, 1.0
        %v927 = vrcp.pop %v926
        %v928 = vmul.f32 %v926, %v927
        %v929 = vsub.f32 1.0, %v928
        %v930 = vmul.f32 %v927, %v929
        %v931 = vadd.f32 %v927, %v930
        %vm932 = vweird.f32 %v926
        %vm933 = vweird.f32 %v927
        %vm934 = vmor %vm932, %vm933
        %v935 = vsel %vm934, %v927, %v931
        %v936 = vand.u32 2147483647, %v926
        %vm937 = vcmp.eq.f32.partialorder %v936, 8.507059e+37
        %v938 = vand.u32 %v926, 2147483648
        %v939 = vor.u32 1.1754944e-38, %v938
        %v940 = vsel %vm937, %v939, %v935
        %v941 = vmul.f32 1.0, %v940
        %v942 = vtanh.pop %v922
        %v943 = vmul.f32 %v941, %v822
        %945 = vrot.lane.b32.xlu0 %v942, 64
        %v946 = vpop.permute.xlu0 %945
        %v948 = vmul.f32 %v941, %v946
        %950 = vrot.lane.b32.xlu0 %v948, 32
        %v951 = vpop.permute.xlu0 %950
        %v953 = vadd.f32 %v943, %v951
        %v954 = vtanh.pop %v953
        %956 = vrot.lane.b32.xlu0 %v954, 64
        %v957 = vpop.permute.xlu0 %956
        %v959 = vmul.f32 %v941, %v957
        %960 = vrot.lane.b32.xlu0 %v874, 48
        %v961 = vpop.permute.xlu0 %960
        %vm963 = vcmask 523648
        %964 = vst.msk [vmem:[%s417] sm:$0xff] %vm963, %v961
        %vm965 = vcmask 1048320
        %966 = vst.msk [vmem:[%s424] sm:$0xff] %vm965, %v959
        %v967 = vmul.f32 %v959, %v575
        %v968 = vmul.f32 %v953, %v579
        %970 = vrot.lane.b32.xlu0 %v968, 64
        %v971 = vpop.permute.xlu0 %970
        %v973 = vadd.f32 %v967, %v971
        %975 = vrot.lane.b32.xlu0 %v973, 32
        %v976 = vpop.permute.xlu0 %975
        %v978 = vsel %vm458, %v976, 0.0
        %979 = vadd.xlane.f32.xlu0 %v978
        %v980 = vpop.xlane.xlu0 %979
        %v981 = vadd.f32 %v980, %v451
        %v982 = vsel %vm463, %v981, -inf
        %983 = vmax.xlane.f32.xlu0 %v982
        %v984 = vpop.xlane.xlu0 %983
        %v985 = vsub.f32 %v981, %v984
        %v986 = vmul.f32 %v985, 1.442695
        %v987 = vpow.pop %v986
        %v988 = vsel %vm463, %v987, 0.0
        %989 = vadd.xlane.f32.xlu0 %v988
        %v990 = vpop.xlane.xlu0 %989
        %v991 = vrcp.pop %v990
        %v992 = vmul.f32 %v990, %v991
        %v993 = vsub.f32 2.0, %v992
        %v994 = vmul.f32 %v991, %v993
        %v995 = vmul.f32 %v987, %v994
        %v996 = vld [vmem:[%s361] sm:$0xff]
        %998 = vrot.lane.b32.xlu0 %v996, 64
        %v999 = vpop.permute.xlu0 %998
        %v1001 = vmul.f32 %v995, %v999
        %1003 = vrot.lane.b32.xlu0 %v959, 32
        %v1004 = vpop.permute.xlu0 %1003
        %v1005 = vsel %vm458, %v1004, 0
        %1007 = vmatpush.msra.mxu0 0.0
        %1008 = vmatpush.msra.mxu0 0.0
        %1009 = vmatpush.msra.mxu0 0.0
        %1010 = vmatpush.msra.mxu0 0.0
        %1011 = vmatpush.msra.mxu0 0.0
        %1012 = vmatpush.msra.mxu0 0.0
        %1013 = vmatpush.msra.mxu0 0.0
        %1014 = vmatpush.msra.mxu0 0.0
        %1015 = vmatpush.msra.mxu0 0.0
        %1016 = vmatpush.msra.mxu0 0.0
        %1017 = vmatpush.msra.mxu0 0.0
        %1018 = vmatpush.msra.mxu0 0.0
        %1019 = vmatpush.msra.mxu0 %v438
        %1020 = vmatpush.msra.mxu0 %v437
        %1021 = vmatpush.msra.mxu0 %v436
        %1022 = vmatpush.msra.mxu0 %v435
        %1023 = vmatmul.f32.gmra.mxu0 %v1005
        %v1024 = vpop.f32.mrf.mxu0
        %v1025 = vadd.f32 0.0, %v1024
        %1026 = vdwg.mxu0
        %v1028 = vsel %vm463, %v1001, 0
        %1030 = vmatpush.msra.mxu0 0.0
        %1031 = vmatpush.msra.mxu0 0.0
        %1032 = vmatpush.msra.mxu0 0.0
        %1033 = vmatpush.msra.mxu0 0.0
        %1034 = vmatpush.msra.mxu0 0.0
        %1035 = vmatpush.msra.mxu0 0.0
        %1036 = vmatpush.msra.mxu0 0.0
        %1037 = vmatpush.msra.mxu0 0.0
        %1038 = vmatpush.msra.mxu0 0.0
        %1039 = vmatpush.msra.mxu0 0.0
        %1040 = vmatpush.msra.mxu0 0.0
        %1041 = vmatpush.msra.mxu0 0.0
        %1042 = vmatpush.msra.mxu0 0.0
        %1043 = vmatpush.msra.mxu0 0.0
        %1044 = vmatpush.msra.mxu0 %v434
        %1045 = vmatpush.msra.mxu0 %v433
        %1046 = vmatmul.f32.gmra.mxu0 %v1028
        %v1047 = vpop.f32.mrf.mxu0
        %v1048 = vadd.f32 %v1025, %v1047
        %1049 = vdwg.mxu0
        %v1050 = vadd.f32 %v1048, %v441
        %v1051 = vxor.u32 %v1050, 2147483648
        %v1052 = vmul.f32 %v1051, 1.442695
        %v1053 = vpow.pop %v1052
        %v1054 = vadd.f32 %v1053, 1.0
        %v1055 = vrcp.pop %v1054
        %v1056 = vmul.f32 %v1054, %v1055
        %v1057 = vsub.f32 1.0, %v1056
        %v1058 = vmul.f32 %v1055, %v1057
        %v1059 = vadd.f32 %v1055, %v1058
        %vm1060 = vweird.f32 %v1054
        %vm1061 = vweird.f32 %v1055
        %vm1062 = vmor %vm1060, %vm1061
        %v1063 = vsel %vm1062, %v1055, %v1059
        %v1064 = vand.u32 2147483647, %v1054
        %vm1065 = vcmp.eq.f32.partialorder %v1064, 8.507059e+37
        %v1066 = vand.u32 %v1054, 2147483648
        %v1067 = vor.u32 1.1754944e-38, %v1066
        %v1068 = vsel %vm1065, %v1067, %v1063
        %v1069 = vmul.f32 1.0, %v1068
        %v1070 = vtanh.pop %v1050
        %v1071 = vmul.f32 %v1069, %v953
        %1073 = vrot.lane.b32.xlu0 %v1070, 64
        %v1074 = vpop.permute.xlu0 %1073
        %v1076 = vmul.f32 %v1069, %v1074
        %1078 = vrot.lane.b32.xlu0 %v1076, 32
        %v1079 = vpop.permute.xlu0 %1078
        %v1081 = vadd.f32 %v1071, %v1079
        %v1082 = vtanh.pop %v1081
        %1084 = vrot.lane.b32.xlu0 %v1082, 64
        %v1085 = vpop.permute.xlu0 %1084
        %v1087 = vmul.f32 %v1069, %v1085
        %1088 = vrot.lane.b32.xlu0 %v1001, 64
        %v1089 = vpop.permute.xlu0 %1088
        %vm1091 = vcmask 654848
        %1092 = vst.msk [vmem:[%s417] sm:$0xff] %vm1091, %v1089
        %1094 = vrot.lane.b32.xlu0 %v1087, 32
        %v1095 = vpop.permute.xlu0 %1094
        %1097 = vst.msk [vmem:[%s424 + $0x8] sm:$0xff] %vm458, %v1095
        %v1098 = vmul.f32 %v1087, %v575
        %v1099 = vmul.f32 %v1081, %v579
        %1101 = vrot.lane.b32.xlu0 %v1099, 64
        %v1102 = vpop.permute.xlu0 %1101
        %v1104 = vadd.f32 %v1098, %v1102
        %1106 = vrot.lane.b32.xlu0 %v1104, 32
        %v1107 = vpop.permute.xlu0 %1106
        %v1109 = vsel %vm458, %v1107, 0.0
        %1110 = vadd.xlane.f32.xlu0 %v1109
        %v1111 = vpop.xlane.xlu0 %1110
        %v1112 = vadd.f32 %v1111, %v451
        %v1113 = vsel %vm463, %v1112, -inf
        %1114 = vmax.xlane.f32.xlu0 %v1113
        %v1115 = vpop.xlane.xlu0 %1114
        %v1116 = vsub.f32 %v1112, %v1115
        %v1117 = vmul.f32 %v1116, 1.442695
        %v1118 = vpow.pop %v1117
        %v1119 = vsel %vm463, %v1118, 0.0
        %1120 = vadd.xlane.f32.xlu0 %v1119
        %v1121 = vpop.xlane.xlu0 %1120
        %v1122 = vrcp.pop %v1121
        %v1123 = vmul.f32 %v1121, %v1122
        %v1124 = vsub.f32 2.0, %v1123
        %v1125 = vmul.f32 %v1122, %v1124
        %v1126 = vmul.f32 %v1118, %v1125
        %v1127 = vld [vmem:[%s361] sm:$0xff]
        %1129 = vrot.lane.b32.xlu0 %v1127, 48
        %v1130 = vpop.permute.xlu0 %1129
        %v1132 = vmul.f32 %v1126, %v1130
        %v1133 = vsel %vm458, %v1095, 0
        %1135 = vmatpush.msra.mxu0 0.0
        %1136 = vmatpush.msra.mxu0 0.0
        %1137 = vmatpush.msra.mxu0 0.0
        %1138 = vmatpush.msra.mxu0 0.0
        %1139 = vmatpush.msra.mxu0 0.0
        %1140 = vmatpush.msra.mxu0 0.0
        %1141 = vmatpush.msra.mxu0 0.0
        %1142 = vmatpush.msra.mxu0 0.0
        %1143 = vmatpush.msra.mxu0 0.0
        %1144 = vmatpush.msra.mxu0 0.0
        %1145 = vmatpush.msra.mxu0 0.0
        %1146 = vmatpush.msra.mxu0 0.0
        %1147 = vmatpush.msra.mxu0 %v438
        %1148 = vmatpush.msra.mxu0 %v437
        %1149 = vmatpush.msra.mxu0 %v436
        %1150 = vmatpush.msra.mxu0 %v435
        %1151 = vmatmul.f32.gmra.mxu0 %v1133
        %v1152 = vpop.f32.mrf.mxu0
        %v1153 = vadd.f32 0.0, %v1152
        %1154 = vdwg.mxu0
        %v1156 = vsel %vm463, %v1132, 0
        %1158 = vmatpush.msra.mxu0 0.0
        %1159 = vmatpush.msra.mxu0 0.0
        %1160 = vmatpush.msra.mxu0 0.0
        %1161 = vmatpush.msra.mxu0 0.0
        %1162 = vmatpush.msra.mxu0 0.0
        %1163 = vmatpush.msra.mxu0 0.0
        %1164 = vmatpush.msra.mxu0 0.0
        %1165 = vmatpush.msra.mxu0 0.0
        %1166 = vmatpush.msra.mxu0 0.0
        %1167 = vmatpush.msra.mxu0 0.0
        %1168 = vmatpush.msra.mxu0 0.0
        %1169 = vmatpush.msra.mxu0 0.0
        %1170 = vmatpush.msra.mxu0 0.0
        %1171 = vmatpush.msra.mxu0 0.0
        %1172 = vmatpush.msra.mxu0 %v434
        %1173 = vmatpush.msra.mxu0 %v433
        %1174 = vmatmul.f32.gmra.mxu0 %v1156
        %v1175 = vpop.f32.mrf.mxu0
        %v1176 = vadd.f32 %v1153, %v1175
        %1177 = vdwg.mxu0
        %v1178 = vadd.f32 %v1176, %v441
        %v1179 = vxor.u32 %v1178, 2147483648
        %v1180 = vmul.f32 %v1179, 1.442695
        %v1181 = vpow.pop %v1180
        %v1182 = vadd.f32 %v1181, 1.0
        %v1183 = vrcp.pop %v1182
        %v1184 = vmul.f32 %v1182, %v1183
        %v1185 = vsub.f32 1.0, %v1184
        %v1186 = vmul.f32 %v1183, %v1185
        %v1187 = vadd.f32 %v1183, %v1186
        %vm1188 = vweird.f32 %v1182
        %vm1189 = vweird.f32 %v1183
        %vm1190 = vmor %vm1188, %vm1189
        %v1191 = vsel %vm1190, %v1183, %v1187
        %v1192 = vand.u32 2147483647, %v1182
        %vm1193 = vcmp.eq.f32.partialorder %v1192, 8.507059e+37
        %v1194 = vand.u32 %v1182, 2147483648
        %v1195 = vor.u32 1.1754944e-38, %v1194
        %v1196 = vsel %vm1193, %v1195, %v1191
        %v1197 = vmul.f32 1.0, %v1196
        %v1198 = vtanh.pop %v1178
        %v1199 = vmul.f32 %v1197, %v1081
        %1201 = vrot.lane.b32.xlu0 %v1198, 64
        %v1202 = vpop.permute.xlu0 %1201
        %v1204 = vmul.f32 %v1197, %v1202
        %1206 = vrot.lane.b32.xlu0 %v1204, 32
        %v1207 = vpop.permute.xlu0 %1206
        %v1209 = vadd.f32 %v1199, %v1207
        %v1210 = vtanh.pop %v1209
        %1212 = vrot.lane.b32.xlu0 %v1210, 64
        %v1213 = vpop.permute.xlu0 %1212
        %v1215 = vmul.f32 %v1197, %v1213
        %1216 = vrot.lane.b32.xlu0 %v1132, 80
        %v1217 = vpop.permute.xlu0 %1216
        %vm1219 = vcmask 786048
        %1220 = vst.msk [vmem:[%s417] sm:$0xff] %vm1219, %v1217
        %1222 = vrot.lane.b32.xlu0 %v1215, 64
        %v1223 = vpop.permute.xlu0 %1222
        %1225 = vst.msk [vmem:[%s424 + $0x8] sm:$0xff] %vm707, %v1223
        %v1226 = vmul.f32 %v1215, %v575
        %v1227 = vmul.f32 %v1209, %v579
        %1229 = vrot.lane.b32.xlu0 %v1227, 64
        %v1230 = vpop.permute.xlu0 %1229
        %v1232 = vadd.f32 %v1226, %v1230
        %1234 = vrot.lane.b32.xlu0 %v1232, 32
        %v1235 = vpop.permute.xlu0 %1234
        %v1237 = vsel %vm458, %v1235, 0.0
        %1238 = vadd.xlane.f32.xlu0 %v1237
        %v1239 = vpop.xlane.xlu0 %1238
        %v1240 = vadd.f32 %v1239, %v451
        %v1241 = vsel %vm463, %v1240, -inf
        %1242 = vmax.xlane.f32.xlu0 %v1241
        %v1243 = vpop.xlane.xlu0 %1242
        %v1244 = vsub.f32 %v1240, %v1243
        %v1245 = vmul.f32 %v1244, 1.442695
        %v1246 = vpow.pop %v1245
        %v1247 = vsel %vm463, %v1246, 0.0
        %1248 = vadd.xlane.f32.xlu0 %v1247
        %v1249 = vpop.xlane.xlu0 %1248
        %v1250 = vrcp.pop %v1249
        %v1251 = vmul.f32 %v1249, %v1250
        %v1252 = vsub.f32 2.0, %v1251
        %v1253 = vmul.f32 %v1250, %v1252
        %v1254 = vmul.f32 %v1246, %v1253
        %v1255 = vld [vmem:[%s361] sm:$0xff]
        %1257 = vrot.lane.b32.xlu0 %v1255, 32
        %v1258 = vpop.permute.xlu0 %1257
        %v1260 = vmul.f32 %v1254, %v1258
        %1261 = vrot.lane.b32.xlu0 %v1215, 32
        %v1262 = vpop.permute.xlu0 %1261
        %v1263 = vsel %vm458, %v1262, 0
        %1265 = vmatpush.msra.mxu0 0.0
        %1266 = vmatpush.msra.mxu0 0.0
        %1267 = vmatpush.msra.mxu0 0.0
        %1268 = vmatpush.msra.mxu0 0.0
        %1269 = vmatpush.msra.mxu0 0.0
        %1270 = vmatpush.msra.mxu0 0.0
        %1271 = vmatpush.msra.mxu0 0.0
        %1272 = vmatpush.msra.mxu0 0.0
        %1273 = vmatpush.msra.mxu0 0.0
        %1274 = vmatpush.msra.mxu0 0.0
        %1275 = vmatpush.msra.mxu0 0.0
        %1276 = vmatpush.msra.mxu0 0.0
        %1277 = vmatpush.msra.mxu0 %v438
        %1278 = vmatpush.msra.mxu0 %v437
        %1279 = vmatpush.msra.mxu0 %v436
        %1280 = vmatpush.msra.mxu0 %v435
        %1281 = vmatmul.f32.gmra.mxu0 %v1263
        %v1282 = vpop.f32.mrf.mxu0
        %v1283 = vadd.f32 0.0, %v1282
        %1284 = vdwg.mxu0
        %v1286 = vsel %vm463, %v1260, 0
        %1288 = vmatpush.msra.mxu0 0.0
        %1289 = vmatpush.msra.mxu0 0.0
        %1290 = vmatpush.msra.mxu0 0.0
        %1291 = vmatpush.msra.mxu0 0.0
        %1292 = vmatpush.msra.mxu0 0.0
        %1293 = vmatpush.msra.mxu0 0.0
        %1294 = vmatpush.msra.mxu0 0.0
        %1295 = vmatpush.msra.mxu0 0.0
        %1296 = vmatpush.msra.mxu0 0.0
        %1297 = vmatpush.msra.mxu0 0.0
        %1298 = vmatpush.msra.mxu0 0.0
        %1299 = vmatpush.msra.mxu0 0.0
        %1300 = vmatpush.msra.mxu0 0.0
        %1301 = vmatpush.msra.mxu0 0.0
        %1302 = vmatpush.msra.mxu0 %v434
        %1303 = vmatpush.msra.mxu0 %v433
        %1304 = vmatmul.f32.gmra.mxu0 %v1286
        %v1305 = vpop.f32.mrf.mxu0
        %v1306 = vadd.f32 %v1283, %v1305
        %1307 = vdwg.mxu0
        %v1308 = vadd.f32 %v1306, %v441
        %v1309 = vxor.u32 %v1308, 2147483648
        %v1310 = vmul.f32 %v1309, 1.442695
        %v1311 = vpow.pop %v1310
        %v1312 = vadd.f32 %v1311, 1.0
        %v1313 = vrcp.pop %v1312
        %v1314 = vmul.f32 %v1312, %v1313
        %v1315 = vsub.f32 1.0, %v1314
        %v1316 = vmul.f32 %v1313, %v1315
        %v1317 = vadd.f32 %v1313, %v1316
        %vm1318 = vweird.f32 %v1312
        %vm1319 = vweird.f32 %v1313
        %vm1320 = vmor %vm1318, %vm1319
        %v1321 = vsel %vm1320, %v1313, %v1317
        %v1322 = vand.u32 2147483647, %v1312
        %vm1323 = vcmp.eq.f32.partialorder %v1322, 8.507059e+37
        %v1324 = vand.u32 %v1312, 2147483648
        %v1325 = vor.u32 1.1754944e-38, %v1324
        %v1326 = vsel %vm1323, %v1325, %v1321
        %v1327 = vmul.f32 1.0, %v1326
        %v1328 = vtanh.pop %v1308
        %v1329 = vmul.f32 %v1327, %v1209
        %1331 = vrot.lane.b32.xlu0 %v1328, 64
        %v1332 = vpop.permute.xlu0 %1331
        %v1334 = vmul.f32 %v1327, %v1332
        %1336 = vrot.lane.b32.xlu0 %v1334, 32
        %v1337 = vpop.permute.xlu0 %1336
        %v1339 = vadd.f32 %v1329, %v1337
        %v1340 = vtanh.pop %v1339
        %1342 = vrot.lane.b32.xlu0 %v1340, 64
        %v1343 = vpop.permute.xlu0 %1342
        %v1345 = vmul.f32 %v1327, %v1343
        %1346 = vrot.lane.b32.xlu0 %v1260, 96
        %v1347 = vpop.permute.xlu0 %1346
        %vm1349 = vcmask 917248
        %1350 = vst.msk [vmem:[%s417] sm:$0xff] %vm1349, %v1347
        %1352 = vrot.lane.b32.xlu0 %v1345, 96
        %v1353 = vpop.permute.xlu0 %1352
        %1355 = vst.msk [vmem:[%s424 + $0x8] sm:$0xff] %vm838, %v1353
        %v1356 = vmul.f32 %v1345, %v575
        %v1357 = vmul.f32 %v1339, %v579
        %1359 = vrot.lane.b32.xlu0 %v1357, 64
        %v1360 = vpop.permute.xlu0 %1359
        %v1362 = vadd.f32 %v1356, %v1360
        %1364 = vrot.lane.b32.xlu0 %v1362, 32
        %v1365 = vpop.permute.xlu0 %1364
        %v1367 = vsel %vm458, %v1365, 0.0
        %1368 = vadd.xlane.f32.xlu0 %v1367
        %v1369 = vpop.xlane.xlu0 %1368
        %v1370 = vadd.f32 %v1369, %v451
        %v1371 = vsel %vm463, %v1370, -inf
        %1372 = vmax.xlane.f32.xlu0 %v1371
        %v1373 = vpop.xlane.xlu0 %1372
        %v1374 = vsub.f32 %v1370, %v1373
        %v1375 = vmul.f32 %v1374, 1.442695
        %v1376 = vpow.pop %v1375
        %v1377 = vsel %vm463, %v1376, 0.0
        %1378 = vadd.xlane.f32.xlu0 %v1377
        %v1379 = vpop.xlane.xlu0 %1378
        %v1380 = vrcp.pop %v1379
        %v1381 = vmul.f32 %v1379, %v1380
        %v1382 = vsub.f32 2.0, %v1381
        %v1383 = vmul.f32 %v1380, %v1382
        %v1384 = vmul.f32 %v1376, %v1383
        %v1385 = vld [vmem:[%s361] sm:$0xff]
        %1387 = vrot.lane.b32.xlu0 %v1385, 16
        %v1388 = vpop.permute.xlu0 %1387
        %v1390 = vmul.f32 %v1384, %v1388
        %1391 = vrot.lane.b32.xlu0 %v1345, 32
        %v1392 = vpop.permute.xlu0 %1391
        %v1393 = vsel %vm458, %v1392, 0
        %1395 = vmatpush.msra.mxu0 0.0
        %1396 = vmatpush.msra.mxu0 0.0
        %1397 = vmatpush.msra.mxu0 0.0
        %1398 = vmatpush.msra.mxu0 0.0
        %1399 = vmatpush.msra.mxu0 0.0
        %1400 = vmatpush.msra.mxu0 0.0
        %1401 = vmatpush.msra.mxu0 0.0
        %1402 = vmatpush.msra.mxu0 0.0
        %1403 = vmatpush.msra.mxu0 0.0
        %1404 = vmatpush.msra.mxu0 0.0
        %1405 = vmatpush.msra.mxu0 0.0
        %1406 = vmatpush.msra.mxu0 0.0
        %1407 = vmatpush.msra.mxu0 %v438
        %1408 = vmatpush.msra.mxu0 %v437
        %1409 = vmatpush.msra.mxu0 %v436
        %1410 = vmatpush.msra.mxu0 %v435
        %1411 = vmatmul.f32.gmra.mxu0 %v1393
        %v1412 = vpop.f32.mrf.mxu0
        %v1413 = vadd.f32 0.0, %v1412
        %1414 = vdwg.mxu0
        %v1416 = vsel %vm463, %v1390, 0
        %1418 = vmatpush.msra.mxu0 0.0
        %1419 = vmatpush.msra.mxu0 0.0
        %1420 = vmatpush.msra.mxu0 0.0
        %1421 = vmatpush.msra.mxu0 0.0
        %1422 = vmatpush.msra.mxu0 0.0
        %1423 = vmatpush.msra.mxu0 0.0
        %1424 = vmatpush.msra.mxu0 0.0
        %1425 = vmatpush.msra.mxu0 0.0
        %1426 = vmatpush.msra.mxu0 0.0
        %1427 = vmatpush.msra.mxu0 0.0
        %1428 = vmatpush.msra.mxu0 0.0
        %1429 = vmatpush.msra.mxu0 0.0
        %1430 = vmatpush.msra.mxu0 0.0
        %1431 = vmatpush.msra.mxu0 0.0
        %1432 = vmatpush.msra.mxu0 %v434
        %1433 = vmatpush.msra.mxu0 %v433
        %1434 = vmatmul.f32.gmra.mxu0 %v1416
        %v1435 = vpop.f32.mrf.mxu0
        %v1436 = vadd.f32 %v1413, %v1435
        %1437 = vdwg.mxu0
        %v1438 = vadd.f32 %v1436, %v441
        %v1439 = vxor.u32 %v1438, 2147483648
        %v1440 = vmul.f32 %v1439, 1.442695
        %v1441 = vpow.pop %v1440
        %v1442 = vadd.f32 %v1441, 1.0
        %v1443 = vrcp.pop %v1442
        %v1444 = vmul.f32 %v1442, %v1443
        %v1445 = vsub.f32 1.0, %v1444
        %v1446 = vmul.f32 %v1443, %v1445
        %v1447 = vadd.f32 %v1443, %v1446
        %vm1448 = vweird.f32 %v1442
        %vm1449 = vweird.f32 %v1443
        %vm1450 = vmor %vm1448, %vm1449
        %v1451 = vsel %vm1450, %v1443, %v1447
        %v1452 = vand.u32 2147483647, %v1442
        %vm1453 = vcmp.eq.f32.partialorder %v1452, 8.507059e+37
        %v1454 = vand.u32 %v1442, 2147483648
        %v1455 = vor.u32 1.1754944e-38, %v1454
        %v1456 = vsel %vm1453, %v1455, %v1451
        %v1457 = vmul.f32 1.0, %v1456
        %v1458 = vtanh.pop %v1438
        %v1459 = vmul.f32 %v1457, %v1339
        %1461 = vrot.lane.b32.xlu0 %v1458, 64
        %v1462 = vpop.permute.xlu0 %1461
        %v1464 = vmul.f32 %v1457, %v1462
        %1466 = vrot.lane.b32.xlu0 %v1464, 32
        %v1467 = vpop.permute.xlu0 %1466
        %v1469 = vadd.f32 %v1459, %v1467
        %v1470 = vtanh.pop %v1469
        %1472 = vrot.lane.b32.xlu0 %v1470, 64
        %v1473 = vpop.permute.xlu0 %1472
        %v1475 = vmul.f32 %v1457, %v1473
        %1476 = vrot.lane.b32.xlu0 %v1390, 112
        %v1477 = vpop.permute.xlu0 %1476
        %vm1479 = vcmask 1048448
        %1480 = vst.msk [vmem:[%s417] sm:$0xff] %vm1479, %v1477
        %1481 = vst.msk [vmem:[%s424 + $0x8] sm:$0xff] %vm965, %v1475
        %s1482 = sadd.s32 %s38, 1
        %p1483 = scmp.lt.s32.totalorder %s1482, 1
        // Predicated region
        $region69: #{tpu_custom_call.1} parent=47 // pred_check
          %p1484 = pneg %p1483
        $region70: #{tpu_custom_call.1} parent=47 // pred_check_branch
          %1486 = sbr.rel (%p1484) target = $region72
        $region71: #{tpu_custom_call.1} parent=47 // pred_region
          %1488 = vrot.lane.b32.xlu0 %v1475, 32
          %v1489 = vpop.permute.xlu0 %1488
          %1491 = vst.msk [vmem:[#allocation2] sm:$0xff] %vm458, %v1489
          %1493 = vrot.lane.b32.xlu0 %v1469, 96
          %v1494 = vpop.permute.xlu0 %1493
          %1496 = vst.msk [vmem:[%s453] sm:$0xff] %vm458, %v1494
        $region72: #{tpu_custom_call.1} parent=47 // pred_fallthru
          _
        %s1497 = sand.u32 %s214, 1
        %s1498 = scalar_lea.sflag [#allocation5], %s1497
        %s1499 = sand.u32 %s214, 1
        %s1500 = smul.addr %s1499, 8
        %s1501 = scalar_lea.vmem [#allocation11], %s1500
        %s1502 = sand.u32 %s242, 1
        %s1503 = scalar_lea.sflag [#allocation13], %s1502
        %s1504 = sand.u32 %s242, 1
        %s1505 = smul.addr %s1504, 16
        %s1506 = scalar_lea.vmem [#allocation12], %s1505
        // Predicated region
        $region73: #{tpu_custom_call.1} parent=47 // pred_check
          %p1507 = pneg %p224
        $region74: #{tpu_custom_call.1} parent=47 // pred_check_branch
          %1509 = sbr.rel (%p1507) target = $region76
        $region75: #{tpu_custom_call.1} parent=47 // pred_region
          %1511 = vsyncadd %s1498, 0
          %s1512 = sadd.s32 %s38, %s37
          %s1513 = smul.addr %s1512, 8
          %s1514 = scalar_lea.hbm %s7, %s1513
          %s1516 = sshll.u32 %s1501, 4
          %s1517 = int_to_ptr.vmem [resolvable:$true] %s1516
          %s1518 = sshll.u32 %s1514, 4
          %s1519 = int_to_ptr.hbm [resolvable:$true] %s1518
          %1521 = dma.vmem_to_hbm [thread:$0]  %s1517, 128, %s1519, %s1498
        $region76: #{tpu_custom_call.1} parent=47 // pred_fallthru
          _
        // Predicated region
        $region77: #{tpu_custom_call.1} parent=47 // pred_check
          %p1522 = pneg %p252
        $region78: #{tpu_custom_call.1} parent=47 // pred_check_branch
          %1524 = sbr.rel (%p1522) target = $region80
        $region79: #{tpu_custom_call.1} parent=47 // pred_region
          %s1525 = smul.u32 2, %s38
          %1527 = vsyncadd %s1503, 0
          %s1528 = smul.addr %s37, 2
          %s1529 = sadd.s32 %s1525, %s1528
          %s1530 = smul.addr %s1529, 8
          %s1531 = scalar_lea.hbm %s8, %s1530
          %s1533 = sshll.u32 %s1506, 4
          %s1534 = int_to_ptr.vmem [resolvable:$true] %s1533
          %s1535 = sshll.u32 %s1531, 4
          %s1536 = int_to_ptr.hbm [resolvable:$true] %s1535
          %1538 = dma.vmem_to_hbm [thread:$0]  %s1534, 256, %s1536, %s1503
        $region80: #{tpu_custom_call.1} parent=47 // pred_fallthru
          _
      $region48: #{tpu_custom_call.1} parent=5 // pred_fallthru
        _
      %p1539 = scmp.le.s32.totalorder 2, %s28
      // Predicated region
      $region81: #{tpu_custom_call.1} parent=5 // pred_check
        %p1540 = pneg %p1539
      $region82: #{tpu_custom_call.1} parent=5 // pred_check_branch
        %1542 = sbr.rel (%p1540) target = $region84
      $region83: #{tpu_custom_call.1} parent=5 // pred_region
        %s1543 = ssub.s32 %s28, 2
        // Predicated region
        $region85: #{tpu_custom_call.1} parent=83 // pred_check
          %p1544 = pneg %p230
        $region86: #{tpu_custom_call.1} parent=83 // pred_check_branch
          %1546 = sbr.rel (%p1544) target = $region88
        $region87: #{tpu_custom_call.1} parent=83 // pred_region
          %s1547 = sand.u32 %s215, 1
          %s1548 = scalar_lea.sflag [#allocation5], %s1547
          %s1549 = sand.u32 %s215, 1
          %s1550 = smul.addr %s1549, 8
          %s1551 = scalar_lea.vmem [#allocation11], %s1550
          %1553 = dma.done %s1548, 128
        $region88: #{tpu_custom_call.1} parent=83 // pred_fallthru
          _
        // Predicated region
        $region89: #{tpu_custom_call.1} parent=83 // pred_check
          %p1554 = pneg %p258
        $region90: #{tpu_custom_call.1} parent=83 // pred_check_branch
          %1556 = sbr.rel (%p1554) target = $region92
        $region91: #{tpu_custom_call.1} parent=83 // pred_region
          %s1557 = sand.u32 %s243, 1
          %s1558 = scalar_lea.sflag [#allocation13], %s1557
          %s1559 = sand.u32 %s243, 1
          %s1560 = smul.addr %s1559, 16
          %s1561 = scalar_lea.vmem [#allocation12], %s1560
          %1563 = dma.done %s1558, 256
        $region92: #{tpu_custom_call.1} parent=83 // pred_fallthru
          _
      $region84: #{tpu_custom_call.1} parent=5 // pred_fallthru
        _
    $region6: #{tpu_custom_call.1} parent=1 // loop_footer
      %s32 = sadd.s32 1, %s28
    $region7: #{tpu_custom_call.1} parent=1 // loop_footer_branch
      %27 = sbr.rel target = $region3
    $region8: #{tpu_custom_call.1} parent=1 // loop_exit
      _
    %1564 = vsyncpa [#allocation4], 1
    %s1565 = scalar_lea.sflag [#allocation4], 1
    %1566 = vsyncpa %s1565, 1
    %1567 = vsyncpa [#allocation7], 1
    %s1568 = scalar_lea.sflag [#allocation7], 1
    %1569 = vsyncpa %s1568, 1
    %1570 = vsyncpa [#allocation10], 1
    %1571 = vsyncpa [#allocation5], 1
    %s1572 = scalar_lea.sflag [#allocation5], 1
    %1573 = vsyncpa %s1572, 1
    %1574 = vsyncpa [#allocation13], 1
    %s1575 = scalar_lea.sflag [#allocation13], 1
    %1576 = vsyncpa %s1575, 1

</llo_original>
